<compile_context>
chip_gen: v7x
topology: tpu7x:2x2x1
jax: 0.10.0
libtpu: 0.0.40
codegen_flags: <defaults>
</compile_context>

<pallas_src>
import jax
import jax.numpy as jnp
from jax.experimental import pallas as pl
from jax.experimental.pallas import tpu as pltpu


# ----------------------------- kernel -----------------------------

def new_attention_kernel(v_ref, q_ref, wv_ref, bv_ref, wq_ref, bq_ref, wl_ref,
                         out_ref):
    tb, k, vd = v_ref.shape
    h = wv_ref.shape[1]

    # v_proj: MXU matmul (bf16 operands, f32 accumulate) + bias + ReLU.
    # The (tb, k, vd) -> (tb*k, vd) collapse is semantically a row-major
    # reshape (always correct); it is also layout preserving because k fills
    # whole sublane tiles for the shapes the wrapper picks.
    v2 = v_ref[...].reshape(tb * k, vd)
    vp = jnp.dot(v2, wv_ref[...], preferred_element_type=jnp.float32)
    vp = jnp.maximum(vp + bv_ref[...], 0.0)                  # [tb*k, h]  f32

    # q_proj with the final Linear(h, 1) weight folded in (no N=1 MXU matmul).
    qp = jnp.dot(q_ref[...], wq_ref[...], preferred_element_type=jnp.float32)
    qp = jnp.maximum(qp + bq_ref[...], 0.0)                  # [tb, h]    f32
    s = qp * wl_ref[...]                                     # [tb, h]    f32

    # logits[b, k] = sum_h v_proj[b, k, h] * s[b, h] — VPU multiply + lane reduce.
    prod = vp.reshape(tb, k, h) * s[:, None, :]              # [tb, k, h]
    logits = jnp.sum(prod, axis=-1)                          # [tb, k]
    # NOTE: the Linear(h, 1) bias is intentionally omitted: softmax over k is
    # invariant to a per-row constant shift.

    # softmax over k — exact f32 division (approx reciprocal is not accurate
    # enough to keep rows normalized to tight tolerances).
    m = jnp.max(logits, axis=-1, keepdims=True)
    e = jnp.exp(logits - m)
    denom = jnp.sum(e, axis=-1, keepdims=True)
    out_ref[...] = (e / denom).astype(out_ref.dtype)


# ----------------------------- wrapper -----------------------------

def _choose_batch_tile(b, k, vd, qd, h, in_itemsize, budget_bytes):
    """Largest valid batch tile whose pipelined working set fits the budget.

    Validity: tb divides b and (tb % 8 == 0 or tb == b) so the second-minor
    dims of the q / out blocks stay sublane aligned.
    """
    resident = (vd * h + qd * h) * in_itemsize + 3 * h * 4   # weights + biases

    def working_set(tb):
        stream = (tb * k * vd + tb * qd) * in_itemsize + tb * k * 4
        interm = (tb * k * h + 2 * tb * h + 2 * tb * k) * 4
        return resident + 2 * stream + interm                # 2x = double buffer

    cands = [d for d in range(b, 0, -1)
             if b % d == 0 and (d % 8 == 0 or d == b)]
    for tb in cands:
        if working_set(tb) <= budget_bytes:
            return tb
    return cands[-1] if cands else b


def new_attention(v, q, params, *, compute_dtype=jnp.bfloat16, batch_tile=None,
                  vmem_budget_bytes=24 * 1024 * 1024):
    """Returns softmax attention weights of shape [B, K, 1] (matches PyTorch)."""
    b, k, vd = v.shape
    qd = q.shape[1]
    wv, bv, wq, bq, wl = params
    h = wv.shape[1]
    assert wl.shape == (1, h), "num_hid must equal q_dim (Linear(q_dim, 1))"

    # Cast streaming inputs + projection weights to the matmul dtype once in
    # HBM (halves v's HBM traffic for bf16). Biases / wl stay f32 (applied to
    # the f32 accumulator).
    vc = v.astype(compute_dtype)
    qc = q.astype(compute_dtype)
    wvc = wv.astype(compute_dtype)
    wqc = wq.astype(compute_dtype)
    bv32 = bv.astype(jnp.float32)
    bq32 = bq.astype(jnp.float32)
    wl32 = wl.astype(jnp.float32)

    itemsize = jnp.dtype(compute_dtype).itemsize
    tb = batch_tile if batch_tile is not None else _choose_batch_tile(
        b, k, vd, qd, h, itemsize, vmem_budget_bytes)
    assert b % tb == 0, f"batch_tile {tb} must divide batch {b}"
    grid = (b // tb,)

    resident = lambda *_: (0, 0)   # constant index_map -> stays in VMEM

    out = pl.pallas_call(
        new_attention_kernel,
        out_shape=jax.ShapeDtypeStruct((b, k), jnp.float32),
        grid=grid,
        in_specs=[
            pl.BlockSpec((tb, k, vd), lambda i: (i, 0, 0)),   # v: streamed
            pl.BlockSpec((tb, qd), lambda i: (i, 0)),         # q: streamed
            pl.BlockSpec((vd, h), resident),                  # Wv (resident)
            pl.BlockSpec((1, h), resident),                   # bv
            pl.BlockSpec((qd, h), resident),                  # Wq (resident)
            pl.BlockSpec((1, h), resident),                   # bq
            pl.BlockSpec((1, h), resident),                   # wl (folded Linear(h,1))
        ],
        out_specs=pl.BlockSpec((tb, k), lambda i: (i, 0)),
        compiler_params=pltpu.CompilerParams(
            dimension_semantics=("parallel",),
            vmem_limit_bytes=32 * 1024 * 1024,
        ),
    )(vc, qc, wvc, bv32, wqc, bq32, wl32)
    return out[:, :, None]


# ----------------- parameter construction + reference (plain JAX) -----------------

def init_linear(key, in_dim, out_dim):
    """PyTorch nn.Linear default init: U(-1/sqrt(in), 1/sqrt(in))."""
    kw, kb = jax.random.split(key)
    bound = 1.0 / float(in_dim) ** 0.5
    w = jax.random.uniform(kw, (out_dim, in_dim), jnp.float32, -bound, bound)
    b = jax.random.uniform(kb, (out_dim,), jnp.float32, -bound, bound)
    return w, b


def weight_norm_eff(w):
    """weight_norm(dim=None): W_eff = g * V / ||V||_F with g initialized to ||V||_F."""
    norm = jnp.sqrt(jnp.sum(w * w))
    g = norm
    return g * w / norm


def new_attention_ref(v, q, params, compute_dtype=jnp.bfloat16):
    """Pure-JAX reference mirroring the kernel numerics (bf16 matmuls, f32 rest)."""
    wv, bv, wq, bq, wl = params
    vp = jnp.einsum("bkv,vh->bkh", v.astype(compute_dtype), wv.astype(compute_dtype),
                    preferred_element_type=jnp.float32) + bv
    vp = jnp.maximum(vp, 0.0)
    qp = jnp.dot(q.astype(compute_dtype), wq.astype(compute_dtype),
                 preferred_element_type=jnp.float32) + bq
    qp = jnp.maximum(qp, 0.0)
    logits = jnp.sum(vp * (qp * wl)[:, None, :], axis=-1)
    w = jax.nn.softmax(logits, axis=-1)
    return w[:, :, None]


if __name__ == "__main__":
    # num_hid must equal q_dim for the module's final Linear(q_dim, 1) to apply
    # to the joint representation of width num_hid (same requirement as PyTorch).
    B, K, Vd, Qd, H = 32, 16, 64, 32, 32

    key = jax.random.PRNGKey(0)
    kv, kq, k1, k2, k3 = jax.random.split(key, 5)
    v = jax.random.normal(kv, (B, K, Vd), jnp.float32)
    q = jax.random.normal(kq, (B, Qd), jnp.float32)

    wv_pt, bv = init_linear(k1, Vd, H)   # PyTorch layout [out, in]
    wq_pt, bq = init_linear(k2, Qd, H)
    wl_pt, _bl = init_linear(k3, H, 1)   # bias dropped: softmax is shift-invariant

    params = (
        weight_norm_eff(wv_pt).T,        # [Vd, H]
        bv.reshape(1, H),
        weight_norm_eff(wq_pt).T,        # [Qd, H]
        bq.reshape(1, H),
        weight_norm_eff(wl_pt),          # [1, H] row, folded into the query path
    )

    # batch_tile=16 forces >1 grid step at this small demo size so the batch
    # pipeline (streamed v/q, resident weights) is actually exercised.
    out = new_attention(v, q, params, compute_dtype=jnp.bfloat16, batch_tile=16)
    jax.block_until_ready(out)

    ref = new_attention_ref(v, q, params, compute_dtype=jnp.bfloat16)
    assert out.shape == (B, K, 1)
    # exact-division softmax -> rows sum to 1 to f32 precision
    assert jnp.allclose(jnp.sum(out[:, :, 0], axis=1), 1.0, atol=1e-3)
    assert jnp.allclose(out, ref, atol=2e-3, rtol=2e-3)
    print("KERNEL_OK")
</pallas_src>

<mosaic_0001>
module attributes {stable_mosaic.version = 11 : i64} {
  func.func @new_attention_kernel(%arg0: i32, %arg1: memref<16x16x64xbf16, #tpu.memory_space<vmem>>, %arg2: memref<16x32xbf16, #tpu.memory_space<vmem>>, %arg3: memref<64x32xbf16, #tpu.memory_space<vmem>>, %arg4: memref<1x32xf32, #tpu.memory_space<vmem>>, %arg5: memref<32x32xbf16, #tpu.memory_space<vmem>>, %arg6: memref<1x32xf32, #tpu.memory_space<vmem>>, %arg7: memref<1x32xf32, #tpu.memory_space<vmem>>, %arg8: memref<16x16xf32, #tpu.memory_space<vmem>>) attributes {dimension_semantics = [#tpu.dimension_semantics<parallel>], iteration_bounds = array<i64: 2>, scalar_prefetch = 0 : i64, scratch_operands = 0 : i64, tpu.core_type = #tpu.core_type<tc>, window_params = [{transform_indices = @transform_0, window_bounds = array<i64: 16, 16, 64>}, {transform_indices = @transform_1, window_bounds = array<i64: 16, 32>}, {pipeline_mode = #tpu.pipeline_mode<synchronous>, transform_indices = @transform_2, window_bounds = array<i64: 64, 32>}, {pipeline_mode = #tpu.pipeline_mode<synchronous>, transform_indices = @transform_3, window_bounds = array<i64: 1, 32>}, {pipeline_mode = #tpu.pipeline_mode<synchronous>, transform_indices = @transform_4, window_bounds = array<i64: 32, 32>}, {pipeline_mode = #tpu.pipeline_mode<synchronous>, transform_indices = @transform_5, window_bounds = array<i64: 1, 32>}, {pipeline_mode = #tpu.pipeline_mode<synchronous>, transform_indices = @transform_6, window_bounds = array<i64: 1, 32>}, {transform_indices = @transform_7, window_bounds = array<i64: 16, 16>}]} {
    %c0 = arith.constant 0 : index
    %c0_0 = arith.constant 0 : index
    %c0_1 = arith.constant 0 : index
    %0 = vector.load %arg1[%c0, %c0_0, %c0_1] : memref<16x16x64xbf16, #tpu.memory_space<vmem>>, vector<16x16x64xbf16>
    %1 = vector.shape_cast %0 : vector<16x16x64xbf16> to vector<256x64xbf16>
    %c0_2 = arith.constant 0 : index
    %c0_3 = arith.constant 0 : index
    %2 = vector.load %arg3[%c0_2, %c0_3] : memref<64x32xbf16, #tpu.memory_space<vmem>>, vector<64x32xbf16>
    %cst = arith.constant dense<0.000000e+00> : vector<256x32xf32>
    %3 = tpu.matmul %1, %2, %cst {dimension_numbers = #tpu.dot_dimension_numbers<[1], [0], [0], [1], [0, 0, 1, 1], [], []>} : vector<256x64xbf16>, vector<64x32xbf16>, vector<256x32xf32> -> vector<256x32xf32>
    %c0_4 = arith.constant 0 : index
    %c0_5 = arith.constant 0 : index
    %4 = vector.load %arg4[%c0_4, %c0_5] : memref<1x32xf32, #tpu.memory_space<vmem>>, vector<1x32xf32>
    %5 = vector.broadcast %4 : vector<1x32xf32> to vector<256x32xf32>
    %6 = arith.addf %3, %5 : vector<256x32xf32>
    %cst_6 = arith.constant 0.000000e+00 : f32
    %7 = vector.broadcast %cst_6 : f32 to vector<256x32xf32>
    %8 = arith.maximumf %6, %7 : vector<256x32xf32>
    %c0_7 = arith.constant 0 : index
    %c0_8 = arith.constant 0 : index
    %9 = vector.load %arg2[%c0_7, %c0_8] : memref<16x32xbf16, #tpu.memory_space<vmem>>, vector<16x32xbf16>
    %c0_9 = arith.constant 0 : index
    %c0_10 = arith.constant 0 : index
    %10 = vector.load %arg5[%c0_9, %c0_10] : memref<32x32xbf16, #tpu.memory_space<vmem>>, vector<32x32xbf16>
    %cst_11 = arith.constant dense<0.000000e+00> : vector<16x32xf32>
    %11 = tpu.matmul %9, %10, %cst_11 {dimension_numbers = #tpu.dot_dimension_numbers<[1], [0], [0], [1], [0, 0, 1, 1], [], []>} : vector<16x32xbf16>, vector<32x32xbf16>, vector<16x32xf32> -> vector<16x32xf32>
    %c0_12 = arith.constant 0 : index
    %c0_13 = arith.constant 0 : index
    %12 = vector.load %arg6[%c0_12, %c0_13] : memref<1x32xf32, #tpu.memory_space<vmem>>, vector<1x32xf32>
    %13 = vector.broadcast %12 : vector<1x32xf32> to vector<16x32xf32>
    %14 = arith.addf %11, %13 : vector<16x32xf32>
    %cst_14 = arith.constant 0.000000e+00 : f32
    %15 = vector.broadcast %cst_14 : f32 to vector<16x32xf32>
    %16 = arith.maximumf %14, %15 : vector<16x32xf32>
    %c0_15 = arith.constant 0 : index
    %c0_16 = arith.constant 0 : index
    %17 = vector.load %arg7[%c0_15, %c0_16] : memref<1x32xf32, #tpu.memory_space<vmem>>, vector<1x32xf32>
    %18 = vector.broadcast %17 : vector<1x32xf32> to vector<16x32xf32>
    %19 = arith.mulf %16, %18 : vector<16x32xf32>
    %20 = vector.shape_cast %8 : vector<256x32xf32> to vector<16x16x32xf32>
    %21 = vector.shape_cast %19 : vector<16x32xf32> to vector<16x1x32xf32>
    %22 = vector.broadcast %21 : vector<16x1x32xf32> to vector<16x16x32xf32>
    %23 = arith.mulf %20, %22 : vector<16x16x32xf32>
    %cst_17 = arith.constant dense<0.000000e+00> : vector<16x16xf32>
    %24 = vector.multi_reduction <add>, %23, %cst_17 [2] : vector<16x16x32xf32> to vector<16x16xf32>
    %cst_18 = arith.constant dense<0xFF800000> : vector<16xf32>
    %25 = vector.multi_reduction <maximumf>, %24, %cst_18 [1] : vector<16x16xf32> to vector<16xf32>
    %26 = vector.shape_cast %25 : vector<16xf32> to vector<16x1xf32>
    %27 = vector.broadcast %26 : vector<16x1xf32> to vector<16x16xf32>
    %28 = arith.subf %24, %27 : vector<16x16xf32>
    %29 = math.exp %28 : vector<16x16xf32>
    %cst_19 = arith.constant dense<0.000000e+00> : vector<16xf32>
    %30 = vector.multi_reduction <add>, %29, %cst_19 [1] : vector<16x16xf32> to vector<16xf32>
    %31 = vector.shape_cast %30 : vector<16xf32> to vector<16x1xf32>
    %32 = vector.broadcast %31 : vector<16x1xf32> to vector<16x16xf32>
    %33 = arith.divf %29, %32 : vector<16x16xf32>
    %c0_20 = arith.constant 0 : index
    %c0_21 = arith.constant 0 : index
    %34 = vector.load %arg8[%c0_20, %c0_21] : memref<16x16xf32, #tpu.memory_space<vmem>>, vector<16x16xf32>
    tpu.vector_store %arg8[%c0_20, %c0_21], %33 {strides = array<i32>} : memref<16x16xf32, #tpu.memory_space<vmem>>, vector<16x16xf32>,
    return
  }
  func.func @transform_0(%arg0: i32) -> (i32, i32, i32) {
    %c0_i32 = arith.constant 0 : i32
    %c0_i32_0 = arith.constant 0 : i32
    %c0_i32_1 = arith.constant 0 : i32
    return %arg0, %c0_i32, %c0_i32_0 : i32, i32, i32
  }
  func.func @transform_1(%arg0: i32) -> (i32, i32) {
    %c0_i32 = arith.constant 0 : i32
    %c0_i32_0 = arith.constant 0 : i32
    return %arg0, %c0_i32 : i32, i32
  }
  func.func @transform_2(%arg0: i32) -> (i32, i32) {
    %c0_i32 = arith.constant 0 : i32
    %c0_i32_0 = arith.constant 0 : i32
    %c0_i32_1 = arith.constant 0 : i32
    return %c0_i32, %c0_i32_0 : i32, i32
  }
  func.func @transform_3(%arg0: i32) -> (i32, i32) {
    %c0_i32 = arith.constant 0 : i32
    %c0_i32_0 = arith.constant 0 : i32
    %c0_i32_1 = arith.constant 0 : i32
    return %c0_i32, %c0_i32_0 : i32, i32
  }
  func.func @transform_4(%arg0: i32) -> (i32, i32) {
    %c0_i32 = arith.constant 0 : i32
    %c0_i32_0 = arith.constant 0 : i32
    %c0_i32_1 = arith.constant 0 : i32
    return %c0_i32, %c0_i32_0 : i32, i32
  }
  func.func @transform_5(%arg0: i32) -> (i32, i32) {
    %c0_i32 = arith.constant 0 : i32
    %c0_i32_0 = arith.constant 0 : i32
    %c0_i32_1 = arith.constant 0 : i32
    return %c0_i32, %c0_i32_0 : i32, i32
  }
  func.func @transform_6(%arg0: i32) -> (i32, i32) {
    %c0_i32 = arith.constant 0 : i32
    %c0_i32_0 = arith.constant 0 : i32
    %c0_i32_1 = arith.constant 0 : i32
    return %c0_i32, %c0_i32_0 : i32, i32
  }
  func.func @transform_7(%arg0: i32) -> (i32, i32) {
    %c0_i32 = arith.constant 0 : i32
    %c0_i32_0 = arith.constant 0 : i32
    return %arg0, %c0_i32 : i32, i32
  }
}

</mosaic_0001>

<llo_original>
// kernel: tpu_custom_call.1
$region0: #{tpu_custom_call.1}
  #allocation0 [shape = 'u32[]', space=smem, size = 0x4, offset = 0x4, fixed_abs, tag = 'smem constant byte address 0x4 - core index']
  #allocation1 [shape = 'u32[144,128]{1,0:T(1,128)}', space=vmem, size = 0x12000, scoped, tag = 'internal scratch']
  %s0 = inlined_call_operand.hbm [shape: bf16[32,16,64], index: 0, kind: input, shape index: {}]
  %s1 = inlined_call_operand.vmem [shape: bf16[32,32], index: 1, kind: input, shape index: {}]
  %s2 = inlined_call_operand.vmem [shape: bf16[64,32], index: 2, kind: input, shape index: {}]
  %s3 = inlined_call_operand.vmem [shape: f32[1,32], index: 3, kind: input, shape index: {}]
  %s4 = inlined_call_operand.vmem [shape: bf16[32,32], index: 4, kind: input, shape index: {}]
  %s5 = inlined_call_operand.vmem [shape: f32[1,32], index: 5, kind: input, shape index: {}]
  %s6 = inlined_call_operand.vmem [shape: f32[1,32], index: 6, kind: input, shape index: {}]
  %s7 = inlined_call_operand.vmem [shape: f32[32,16], index: 7, kind: output, shape index: {}]
  %s8 = sld [smem:[#allocation0]]
  $region65: #{tpu_custom_call.1} parent=0
    _
  %s10 = ssub.s32 1, %s8
  %s11 = scalar_select 0, %s10, %s8
  $region1: #{tpu_custom_call.1} parent=0
    #allocation2 [shape = 'u8[131072]{0}', space=vmem, size = 0x20000, scoped, tag = 'input window, operand 0']
    #allocation3 [shape = 's32[2]{0}', space=sflag, size = 0x8, scoped, tag = 'scoped memory for tpu_custom_call.1']
    %12 = vsyncpa [#allocation3], 0
    %s13 = scalar_lea.sflag [#allocation3], 1
    %14 = vsyncpa %s13, 0
    loop: start=0, step=1, limit=4
    $region2: #{tpu_custom_call.1} parent=1 // loop_pre_header
      _
    $region3: #{tpu_custom_call.1} parent=1 // loop_header
      %s16 = sphi 0, %s20
      %p17 = scmp.ge.s32.totalorder %s16, 4
      %s26 = sphi 0, %s28
      %s29 = sphi 0, %s26
      %s30 = sphi 0, %s29
      %s46 = sphi 0, %s30
      %s52 = sphi 0, %s54
      %s55 = sphi 0, %s52
      %s56 = sphi 0, %s55
      %s72 = sphi 0, %s56
      %s76 = sphi 0, %s76
      %s78 = sphi 0, %s76
      %s79 = sphi 0, %s78
      %s93 = sphi 0, %s79
      %s97 = sphi 0, %s97
      %s99 = sphi 0, %s97
      %s100 = sphi 0, %s99
      %s114 = sphi 0, %s100
      %s118 = sphi 0, %s118
      %s120 = sphi 0, %s118
      %s121 = sphi 0, %s120
      %s135 = sphi 0, %s121
      %s139 = sphi 0, %s139
      %s141 = sphi 0, %s139
      %s142 = sphi 0, %s141
      %s156 = sphi 0, %s142
      %s160 = sphi 0, %s160
      %s162 = sphi 0, %s160
      %s163 = sphi 0, %s162
      %s177 = sphi 0, %s163
      %s183 = sphi 0, %s185
      %s186 = sphi 0, %s183
      %s187 = sphi 0, %s186
      %s203 = sphi 0, %s187
    $region4: #{tpu_custom_call.1} parent=1 // loop_header_branch
      %19 = sbr.rel (%p17) target = $region8
    $region5: #{tpu_custom_call.1} parent=1 // loop_body
      %s21 = ssub.s32 %s16, 1
      %s22 = ssub.s32 %s16, 2
      %s23 = sadd.s32 %s16, 1
      %s24 = ssub.s32 %s16, %s23
      %p25 = scmp.eq.s32.totalorder %s24, 0
      %s27 = sadd.s32 %s26, 1
      %s28 = scalar_select %p25, %s26, %s27
      %p31 = pneg %p25
      %p32 = scmp.eq.s32.totalorder %s16, 1
      %p33 = por %p31, %p32
      %p34 = scmp.ne.s32.totalorder %s26, %s29
      %p35 = scmp.eq.s32.totalorder %s16, 0
      %p36 = por %p34, %p35
      %p37 = scmp.ne.s32.totalorder %s26, %s29
      %p38 = scmp.eq.s32.totalorder %s21, 1
      %p39 = por %p37, %p38
      %p40 = scmp.ne.s32.totalorder %s29, %s30
      %p41 = scmp.eq.s32.totalorder %s21, 0
      %p42 = por %p40, %p41
      %p43 = scmp.ne.s32.totalorder %s29, %s30
      %p44 = scmp.eq.s32.totalorder %s22, 1
      %p45 = por %p43, %p44
      %p47 = scmp.ne.s32.totalorder %s30, %s46
      %p48 = scmp.eq.s32.totalorder %s22, 0
      %p49 = por %p47, %p48
      %s50 = ssub.s32 %s16, %s23
      %p51 = scmp.eq.s32.totalorder %s50, 0
      %s53 = sadd.s32 %s52, 1
      %s54 = scalar_select %p51, %s52, %s53
      %p57 = pneg %p51
      %p58 = scmp.eq.s32.totalorder %s16, 1
      %p59 = por %p57, %p58
      %p60 = scmp.ne.s32.totalorder %s52, %s55
      %p61 = scmp.eq.s32.totalorder %s16, 0
      %p62 = por %p60, %p61
      %p63 = scmp.ne.s32.totalorder %s52, %s55
      %p64 = scmp.eq.s32.totalorder %s21, 1
      %p65 = por %p63, %p64
      %p66 = scmp.ne.s32.totalorder %s55, %s56
      %p67 = scmp.eq.s32.totalorder %s21, 0
      %p68 = por %p66, %p67
      %p69 = scmp.ne.s32.totalorder %s55, %s56
      %p70 = scmp.eq.s32.totalorder %s22, 1
      %p71 = por %p69, %p70
      %p73 = scmp.ne.s32.totalorder %s56, %s72
      %p74 = scmp.eq.s32.totalorder %s22, 0
      %p75 = por %p73, %p74
      %s77 = sadd.s32 %s76, 1
      %p80 = scmp.eq.s32.totalorder %s16, 1
      %p81 = scmp.ne.s32.totalorder %s76, %s78
      %p82 = scmp.eq.s32.totalorder %s16, 0
      %p83 = por %p81, %p82
      %p84 = scmp.ne.s32.totalorder %s76, %s78
      %p85 = scmp.eq.s32.totalorder %s21, 1
      %p86 = por %p84, %p85
      %p87 = scmp.ne.s32.totalorder %s78, %s79
      %p88 = scmp.eq.s32.totalorder %s21, 0
      %p89 = por %p87, %p88
      %p90 = scmp.ne.s32.totalorder %s78, %s79
      %p91 = scmp.eq.s32.totalorder %s22, 1
      %p92 = por %p90, %p91
      %p94 = scmp.ne.s32.totalorder %s79, %s93
      %p95 = scmp.eq.s32.totalorder %s22, 0
      %p96 = por %p94, %p95
      %s98 = sadd.s32 %s97, 1
      %p101 = scmp.eq.s32.totalorder %s16, 1
      %p102 = scmp.ne.s32.totalorder %s97, %s99
      %p103 = scmp.eq.s32.totalorder %s16, 0
      %p104 = por %p102, %p103
      %p105 = scmp.ne.s32.totalorder %s97, %s99
      %p106 = scmp.eq.s32.totalorder %s21, 1
      %p107 = por %p105, %p106
      %p108 = scmp.ne.s32.totalorder %s99, %s100
      %p109 = scmp.eq.s32.totalorder %s21, 0
      %p110 = por %p108, %p109
      %p111 = scmp.ne.s32.totalorder %s99, %s100
      %p112 = scmp.eq.s32.totalorder %s22, 1
      %p113 = por %p111, %p112
      %p115 = scmp.ne.s32.totalorder %s100, %s114
      %p116 = scmp.eq.s32.totalorder %s22, 0
      %p117 = por %p115, %p116
      %s119 = sadd.s32 %s118, 1
      %p122 = scmp.eq.s32.totalorder %s16, 1
      %p123 = scmp.ne.s32.totalorder %s118, %s120
      %p124 = scmp.eq.s32.totalorder %s16, 0
      %p125 = por %p123, %p124
      %p126 = scmp.ne.s32.totalorder %s118, %s120
      %p127 = scmp.eq.s32.totalorder %s21, 1
      %p128 = por %p126, %p127
      %p129 = scmp.ne.s32.totalorder %s120, %s121
      %p130 = scmp.eq.s32.totalorder %s21, 0
      %p131 = por %p129, %p130
      %p132 = scmp.ne.s32.totalorder %s120, %s121
      %p133 = scmp.eq.s32.totalorder %s22, 1
      %p134 = por %p132, %p133
      %p136 = scmp.ne.s32.totalorder %s121, %s135
      %p137 = scmp.eq.s32.totalorder %s22, 0
      %p138 = por %p136, %p137
      %s140 = sadd.s32 %s139, 1
      %p143 = scmp.eq.s32.totalorder %s16, 1
      %p144 = scmp.ne.s32.totalorder %s139, %s141
      %p145 = scmp.eq.s32.totalorder %s16, 0
      %p146 = por %p144, %p145
      %p147 = scmp.ne.s32.totalorder %s139, %s141
      %p148 = scmp.eq.s32.totalorder %s21, 1
      %p149 = por %p147, %p148
      %p150 = scmp.ne.s32.totalorder %s141, %s142
      %p151 = scmp.eq.s32.totalorder %s21, 0
      %p152 = por %p150, %p151
      %p153 = scmp.ne.s32.totalorder %s141, %s142
      %p154 = scmp.eq.s32.totalorder %s22, 1
      %p155 = por %p153, %p154
      %p157 = scmp.ne.s32.totalorder %s142, %s156
      %p158 = scmp.eq.s32.totalorder %s22, 0
      %p159 = por %p157, %p158
      %s161 = sadd.s32 %s160, 1
      %p164 = scmp.eq.s32.totalorder %s16, 1
      %p165 = scmp.ne.s32.totalorder %s160, %s162
      %p166 = scmp.eq.s32.totalorder %s16, 0
      %p167 = por %p165, %p166
      %p168 = scmp.ne.s32.totalorder %s160, %s162
      %p169 = scmp.eq.s32.totalorder %s21, 1
      %p170 = por %p168, %p169
      %p171 = scmp.ne.s32.totalorder %s162, %s163
      %p172 = scmp.eq.s32.totalorder %s21, 0
      %p173 = por %p171, %p172
      %p174 = scmp.ne.s32.totalorder %s162, %s163
      %p175 = scmp.eq.s32.totalorder %s22, 1
      %p176 = por %p174, %p175
      %p178 = scmp.ne.s32.totalorder %s163, %s177
      %p179 = scmp.eq.s32.totalorder %s22, 0
      %p180 = por %p178, %p179
      %s181 = ssub.s32 %s16, %s23
      %p182 = scmp.eq.s32.totalorder %s181, 0
      %s184 = sadd.s32 %s183, 1
      %s185 = scalar_select %p182, %s183, %s184
      %p188 = pneg %p182
      %p189 = scmp.eq.s32.totalorder %s16, 1
      %p190 = por %p188, %p189
      %p191 = scmp.ne.s32.totalorder %s183, %s186
      %p192 = scmp.eq.s32.totalorder %s16, 0
      %p193 = por %p191, %p192
      %p194 = scmp.ne.s32.totalorder %s183, %s186
      %p195 = scmp.eq.s32.totalorder %s21, 1
      %p196 = por %p194, %p195
      %p197 = scmp.ne.s32.totalorder %s186, %s187
      %p198 = scmp.eq.s32.totalorder %s21, 0
      %p199 = por %p197, %p198
      %p200 = scmp.ne.s32.totalorder %s186, %s187
      %p201 = scmp.eq.s32.totalorder %s22, 1
      %p202 = por %p200, %p201
      %p204 = scmp.ne.s32.totalorder %s187, %s203
      %p205 = scmp.eq.s32.totalorder %s22, 0
      %p206 = por %p204, %p205
      %p207 = scmp.le.s32.totalorder 1, %s16
      %p208 = scmp.lt.s32.totalorder %s16, 3
      %p209 = pnand %p207, %p208
      %p210 = pneg %p209
      // Predicated region
      $region9: #{tpu_custom_call.1} parent=5 // pred_check
        _
      $region10: #{tpu_custom_call.1} parent=5 // pred_check_branch
        %212 = sbr.rel (%p209) target = $region12
      $region11: #{tpu_custom_call.1} parent=5 // pred_region
        %s213 = ssub.s32 %s16, 1
        // Predicated region
        $region13: #{tpu_custom_call.1} parent=11 // pred_check
          %p214 = pneg %p89
        $region14: #{tpu_custom_call.1} parent=11 // pred_check_branch
          %216 = sbr.rel (%p214) target = $region16
        $region15: #{tpu_custom_call.1} parent=11 // pred_region
          _
        $region16: #{tpu_custom_call.1} parent=11 // pred_fallthru
          _
        // Predicated region
        $region17: #{tpu_custom_call.1} parent=11 // pred_check
          %p217 = pneg %p110
        $region18: #{tpu_custom_call.1} parent=11 // pred_check_branch
          %219 = sbr.rel (%p217) target = $region20
        $region19: #{tpu_custom_call.1} parent=11 // pred_region
          _
        $region20: #{tpu_custom_call.1} parent=11 // pred_fallthru
          _
        // Predicated region
        $region21: #{tpu_custom_call.1} parent=11 // pred_check
          %p220 = pneg %p131
        $region22: #{tpu_custom_call.1} parent=11 // pred_check_branch
          %222 = sbr.rel (%p220) target = $region24
        $region23: #{tpu_custom_call.1} parent=11 // pred_region
          _
        $region24: #{tpu_custom_call.1} parent=11 // pred_fallthru
          _
        // Predicated region
        $region25: #{tpu_custom_call.1} parent=11 // pred_check
          %p223 = pneg %p152
        $region26: #{tpu_custom_call.1} parent=11 // pred_check_branch
          %225 = sbr.rel (%p223) target = $region28
        $region27: #{tpu_custom_call.1} parent=11 // pred_region
          _
        $region28: #{tpu_custom_call.1} parent=11 // pred_fallthru
          _
        // Predicated region
        $region29: #{tpu_custom_call.1} parent=11 // pred_check
          %p226 = pneg %p173
        $region30: #{tpu_custom_call.1} parent=11 // pred_check_branch
          %228 = sbr.rel (%p226) target = $region32
        $region31: #{tpu_custom_call.1} parent=11 // pred_region
          _
        $region32: #{tpu_custom_call.1} parent=11 // pred_fallthru
          _
      $region12: #{tpu_custom_call.1} parent=5 // pred_fallthru
        _
      %p229 = scmp.lt.s32.totalorder %s16, 2
      // Predicated region
      $region33: #{tpu_custom_call.1} parent=5 // pred_check
        %p230 = pneg %p229
      $region34: #{tpu_custom_call.1} parent=5 // pred_check_branch
        %232 = sbr.rel (%p230) target = $region36
      $region35: #{tpu_custom_call.1} parent=5 // pred_region
        // Predicated region
        $region37: #{tpu_custom_call.1} parent=35 // pred_check
          %p233 = pneg %p36
        $region38: #{tpu_custom_call.1} parent=35 // pred_check_branch
          %235 = sbr.rel (%p233) target = $region40
        $region39: #{tpu_custom_call.1} parent=35 // pred_region
          %s236 = sand.u32 %s26, 1
          %s237 = scalar_lea.sflag [#allocation3], %s236
          %s238 = sand.u32 %s26, 1
          %s239 = smul.addr %s238, 128
          %s240 = scalar_lea.vmem [#allocation2], %s239
          %s241 = smul.u32 16, %s16
          %s243 = ssub.s32 2048, 2048
          %244 = vsyncadd %s237, %s243
          %s245 = smul.addr %s241, 2
          %s246 = smul.addr %s245, 64
          %s247 = scalar_lea.hbm %s0, %s246
          %s248 = sshll.u32 %s240, 4
          %s249 = int_to_ptr.vmem [resolvable:$true] %s248
          %254 = dma.hbm_to_vmem [thread:$0]  %s247, 2048, %s249, %s237, 64, 64, 4
        $region40: #{tpu_custom_call.1} parent=35 // pred_fallthru
          _
        // Predicated region
        $region41: #{tpu_custom_call.1} parent=35 // pred_check
          %p255 = pneg %p62
        $region42: #{tpu_custom_call.1} parent=35 // pred_check_branch
          %257 = sbr.rel (%p255) target = $region44
        $region43: #{tpu_custom_call.1} parent=35 // pred_region
          %s258 = smul.u32 2, %s16
          %p259 = scmp.lt.s32.totalorder %s258, 3
          %s260 = scalar_select %p259, %s258, 3
          %s261 = smul.addr %s260, 4
          %s262 = scalar_lea.vmem %s1, %s261
          %s263 = smul.u32 2, %s16
        $region44: #{tpu_custom_call.1} parent=35 // pred_fallthru
          _
      $region36: #{tpu_custom_call.1} parent=5 // pred_fallthru
        _
      %p264 = scmp.le.s32.totalorder 1, %s16
      %p265 = scmp.lt.s32.totalorder %s16, 3
      %p266 = pnand %p264, %p265
      %p267 = pneg %p266
      // Predicated region
      $region45: #{tpu_custom_call.1} parent=5 // pred_check
        _
      $region46: #{tpu_custom_call.1} parent=5 // pred_check_branch
        %269 = sbr.rel (%p266) target = $region48
      $region47: #{tpu_custom_call.1} parent=5 // pred_region
        %s270 = ssub.s32 %s16, 1
        %s271 = sand.u32 %s29, 1
        %s272 = scalar_lea.sflag [#allocation3], %s271
        %s273 = sand.u32 %s29, 1
        %s274 = smul.addr %s273, 128
        %s275 = scalar_lea.vmem [#allocation2], %s274
        // Predicated region
        $region49: #{tpu_custom_call.1} parent=47 // pred_check
          %p276 = pneg %p42
        $region50: #{tpu_custom_call.1} parent=47 // pred_check_branch
          %278 = sbr.rel (%p276) target = $region52
        $region51: #{tpu_custom_call.1} parent=47 // pred_region
          %279 = dma.done %s272, 2048
        $region52: #{tpu_custom_call.1} parent=47 // pred_fallthru
          _
        %s280 = sand.u32 %s29, 1
        %s281 = scalar_lea.sflag [#allocation3], %s280
        %s282 = sand.u32 %s29, 1
        %s283 = smul.addr %s282, 128
        %s284 = scalar_lea.vmem [#allocation2], %s283
        %p285 = pneg %p42
        %p286 = pneg %p39
        %s287 = smul.u32 2, %s21
        %p288 = scmp.lt.s32.totalorder %s287, 3
        %s289 = scalar_select %p288, %s287, 3
        %s290 = smul.addr %s289, 4
        %s291 = scalar_lea.vmem %s1, %s290
        %p292 = pneg %p68
        %p293 = pneg %p65
        %p294 = pneg %p89
        %p295 = pneg %p86
        %p296 = pneg %p110
        %p297 = pneg %p107
        %p298 = pneg %p131
        %p299 = pneg %p128
        %p300 = pneg %p152
        %p301 = pneg %p149
        %p302 = pneg %p173
        %p303 = pneg %p170
        %p304 = pneg %p199
        %p305 = pneg %p196
        %s306 = smul.u32 2, %s21
        %p307 = scmp.lt.s32.totalorder %s306, 3
        %s308 = scalar_select %p307, %s306, 3
        %s309 = smul.addr %s308, 8
        %s310 = scalar_lea.vmem %s7, %s309
        %s311 = smul.u32 16, %s21
        %s312 = smul.u32 2, %s21
        %p313 = scmp.lt.s32.totalorder %s312, 3
        %s314 = scalar_select %p313, %s312, 3
        %s315 = smul.addr %s314, 4
        %s316 = scalar_lea.vmem %s1, %s315
        %s317 = smul.u32 2, %s21
        %s318 = smul.u32 2, %s21
        %p319 = scmp.lt.s32.totalorder %s318, 3
        %s320 = scalar_select %p319, %s318, 3
        %s321 = smul.addr %s320, 8
        %s322 = scalar_lea.vmem %s7, %s321
        %s323 = smul.u32 2, %s21
        %v325 = vld [vmem:[%s275] sm:$0xf]
        %v326 = vld [vmem:[%s275 + $0x4] sm:$0xf]
        %v327 = vld [vmem:[%s275 + $0x8] sm:$0xf]
        %v328 = vld [vmem:[%s275 + $0xc] sm:$0xf]
        %v329 = vld [vmem:[%s275 + $0x10] sm:$0xf]
        %v330 = vld [vmem:[%s275 + $0x14] sm:$0xf]
        %v331 = vld [vmem:[%s275 + $0x18] sm:$0xf]
        %v332 = vld [vmem:[%s275 + $0x1c] sm:$0xf]
        %v333 = vld [vmem:[%s275 + $0x20] sm:$0xf]
        %v334 = vld [vmem:[%s275 + $0x24] sm:$0xf]
        %v335 = vld [vmem:[%s275 + $0x28] sm:$0xf]
        %v336 = vld [vmem:[%s275 + $0x2c] sm:$0xf]
        %v337 = vld [vmem:[%s275 + $0x30] sm:$0xf]
        %v338 = vld [vmem:[%s275 + $0x34] sm:$0xf]
        %v339 = vld [vmem:[%s275 + $0x38] sm:$0xf]
        %v340 = vld [vmem:[%s275 + $0x3c] sm:$0xf]
        %v341 = vld [vmem:[%s275 + $0x40] sm:$0xf]
        %v342 = vld [vmem:[%s275 + $0x44] sm:$0xf]
        %v343 = vld [vmem:[%s275 + $0x48] sm:$0xf]
        %v344 = vld [vmem:[%s275 + $0x4c] sm:$0xf]
        %v345 = vld [vmem:[%s275 + $0x50] sm:$0xf]
        %v346 = vld [vmem:[%s275 + $0x54] sm:$0xf]
        %v347 = vld [vmem:[%s275 + $0x58] sm:$0xf]
        %v348 = vld [vmem:[%s275 + $0x5c] sm:$0xf]
        %v349 = vld [vmem:[%s275 + $0x60] sm:$0xf]
        %v350 = vld [vmem:[%s275 + $0x64] sm:$0xf]
        %v351 = vld [vmem:[%s275 + $0x68] sm:$0xf]
        %v352 = vld [vmem:[%s275 + $0x6c] sm:$0xf]
        %v353 = vld [vmem:[%s275 + $0x70] sm:$0xf]
        %v354 = vld [vmem:[%s275 + $0x74] sm:$0xf]
        %v355 = vld [vmem:[%s275 + $0x78] sm:$0xf]
        %v356 = vld [vmem:[%s275 + $0x7c] sm:$0xf]
        %v357 = vld [vmem:[%s2] sm:$0xf]
        %v358 = vld [vmem:[%s2 + $0x4] sm:$0xf]
        %v359 = vld [vmem:[%s2 + $0x8] sm:$0xf]
        %v360 = vld [vmem:[%s2 + $0xc] sm:$0xf]
        %v361 = vld [vmem:[%s2 + $0x10] sm:$0xf]
        %v362 = vld [vmem:[%s2 + $0x14] sm:$0xf]
        %v363 = vld [vmem:[%s2 + $0x18] sm:$0xf]
        %v364 = vld [vmem:[%s2 + $0x1c] sm:$0xf]
        %v365 = vld [vmem:[%s3] sm:$0x1]
        %v367 = vlaneseq
        %v368 = vshrl.u32 %v367, 7
        %v369 = vsub.s32 0, %v368
        %v370 = vrot.slane %v365, %v369
        %v404 = vunpack.c.l.b16 %v325
        %v405 = vunpack.c.l.b16 %v326
        %v406 = vunpack.c.l.b16 %v327
        %v407 = vunpack.c.l.b16 %v328
        %v408 = vunpack.c.l.b16 %v329
        %v409 = vunpack.c.l.b16 %v330
        %v410 = vunpack.c.l.b16 %v331
        %v411 = vunpack.c.l.b16 %v332
        %v412 = vunpack.c.l.b16 %v333
        %v413 = vunpack.c.l.b16 %v334
        %v414 = vunpack.c.l.b16 %v335
        %v415 = vunpack.c.l.b16 %v336
        %v416 = vunpack.c.l.b16 %v337
        %v417 = vunpack.c.l.b16 %v338
        %v418 = vunpack.c.l.b16 %v339
        %v419 = vunpack.c.l.b16 %v340
        %v420 = vunpack.c.l.b16 %v341
        %v421 = vunpack.c.l.b16 %v342
        %v422 = vunpack.c.l.b16 %v343
        %v423 = vunpack.c.l.b16 %v344
        %v424 = vunpack.c.l.b16 %v345
        %v425 = vunpack.c.l.b16 %v346
        %v426 = vunpack.c.l.b16 %v347
        %v427 = vunpack.c.l.b16 %v348
        %v428 = vunpack.c.l.b16 %v349
        %v429 = vunpack.c.l.b16 %v350
        %v430 = vunpack.c.l.b16 %v351
        %v431 = vunpack.c.l.b16 %v352
        %v432 = vunpack.c.l.b16 %v353
        %v433 = vunpack.c.l.b16 %v354
        %v434 = vunpack.c.l.b16 %v355
        %v435 = vunpack.c.l.b16 %v356
        %v436 = vpack.c.b16 %v405, %v404
        %v437 = vpack.c.b16 %v407, %v406
        %v438 = vpack.c.b16 %v409, %v408
        %v439 = vpack.c.b16 %v411, %v410
        %v440 = vpack.c.b16 %v413, %v412
        %v441 = vpack.c.b16 %v415, %v414
        %v442 = vpack.c.b16 %v417, %v416
        %v443 = vpack.c.b16 %v419, %v418
        %v444 = vpack.c.b16 %v421, %v420
        %v445 = vpack.c.b16 %v423, %v422
        %v446 = vpack.c.b16 %v425, %v424
        %v447 = vpack.c.b16 %v427, %v426
        %v448 = vpack.c.b16 %v429, %v428
        %v449 = vpack.c.b16 %v431, %v430
        %v450 = vpack.c.b16 %v433, %v432
        %v451 = vpack.c.b16 %v435, %v434
        %v460 = vunpack.c.l.b16 %v357
        %v461 = vunpack.c.l.b16 %v358
        %v462 = vunpack.c.l.b16 %v359
        %v463 = vunpack.c.l.b16 %v360
        %v464 = vunpack.c.l.b16 %v361
        %v465 = vunpack.c.l.b16 %v362
        %v466 = vunpack.c.l.b16 %v363
        %v467 = vunpack.c.l.b16 %v364
        %v468 = vpack.c.b16 %v461, %v460
        %v469 = vpack.c.b16 %v463, %v462
        %v470 = vpack.c.b16 %v465, %v464
        %v471 = vpack.c.b16 %v467, %v466
        %vm476 = vcmask 523264
        %v478 = vsel %vm476, %v436, 0
        %v481 = vsel %vm476, %v437, 0
        %v484 = vsel %vm476, %v438, 0
        %v487 = vsel %vm476, %v439, 0
        %v490 = vsel %vm476, %v440, 0
        %v493 = vsel %vm476, %v441, 0
        %v496 = vsel %vm476, %v442, 0
        %v499 = vsel %vm476, %v443, 0
        %v502 = vsel %vm476, %v444, 0
        %v505 = vsel %vm476, %v445, 0
        %v508 = vsel %vm476, %v446, 0
        %v511 = vsel %vm476, %v447, 0
        %v514 = vsel %vm476, %v448, 0
        %v517 = vsel %vm476, %v449, 0
        %v520 = vsel %vm476, %v450, 0
        %v523 = vsel %vm476, %v451, 0
        %525 = vmatprep.subr.bf16.mxu0 0
        %526 = vmatpush1.bf16.msra.mxu0 %v468
        %527 = vmatprep.subr.bf16.mxu0 0
        %528 = vmatpush1.bf16.msra.mxu0 %v469
        %529 = vmatprep.subr.bf16.mxu0 0
        %530 = vmatpush1.bf16.msra.mxu0 %v470
        %531 = vmatprep.subr.bf16.mxu0 0
        %532 = vmatpush1.bf16.msra.mxu0 %v471
        %533 = vmatprep.subr.bf16.mxu0 0
        %534 = vmatpush1.bf16.msra.mxu0 0
        %535 = vmatprep.subr.bf16.mxu0 0
        %536 = vmatpush1.bf16.msra.mxu0 0
        %537 = vmatprep.subr.bf16.mxu0 0
        %538 = vmatpush1.bf16.msra.mxu0 0
        %539 = vmatprep.subr.bf16.mxu0 0
        %540 = vmatpush1.bf16.msra.mxu0 0
        %541 = vmatprep.subr.bf16.mxu0 0
        %542 = vmatpush1.bf16.msra.mxu0 0
        %543 = vmatprep.subr.bf16.mxu0 0
        %544 = vmatpush1.bf16.msra.mxu0 0
        %545 = vmatprep.subr.bf16.mxu0 0
        %546 = vmatpush1.bf16.msra.mxu0 0
        %547 = vmatprep.subr.bf16.mxu0 0
        %548 = vmatpush1.bf16.msra.mxu0 0
        %549 = vmatprep.subr.bf16.mxu0 0
        %550 = vmatpush1.bf16.msra.mxu0 0
        %551 = vmatprep.subr.bf16.mxu0 0
        %552 = vmatpush1.bf16.msra.mxu0 0
        %553 = vmatprep.subr.bf16.mxu0 0
        %554 = vmatpush1.bf16.msra.mxu0 0
        %555 = vmatprep.subr.bf16.mxu0 0
        %556 = vmatpush1.bf16.msra.mxu0 0
        %557 = vmatprep.mubr.bf16.mxu0 0
        %558 = vmatmul.mubr.bf16.gmra.mrb[0].mxu0 %v478
        %v559 = vpop.f32.mrb[0].mxu0
        %v560 = vadd.f32 %v370, %v559
        %v561 = vpop.f32.mrb[0].mxu0
        %v562 = vpop.f32.mrb[0].mxu0
        %v563 = vadd.f32 %v370, %v562
        %v564 = vpop.f32.mrb[0].mxu0
        %565 = vmatprep.mubr.bf16.mxu0 0
        %566 = vmatmul.mubr.bf16.gmra.mrb[0].mxu0 %v481
        %v567 = vpop.f32.mrb[0].mxu0
        %v568 = vadd.f32 %v370, %v567
        %v569 = vpop.f32.mrb[0].mxu0
        %v570 = vpop.f32.mrb[0].mxu0
        %v571 = vadd.f32 %v370, %v570
        %v572 = vpop.f32.mrb[0].mxu0
        %573 = vmatprep.mubr.bf16.mxu0 0
        %574 = vmatmul.mubr.bf16.gmra.mrb[0].mxu0 %v484
        %v575 = vpop.f32.mrb[0].mxu0
        %v576 = vadd.f32 %v370, %v575
        %v577 = vpop.f32.mrb[0].mxu0
        %v578 = vpop.f32.mrb[0].mxu0
        %v579 = vadd.f32 %v370, %v578
        %v580 = vpop.f32.mrb[0].mxu0
        %581 = vmatprep.mubr.bf16.mxu0 0
        %582 = vmatmul.mubr.bf16.gmra.mrb[0].mxu0 %v487
        %v583 = vpop.f32.mrb[0].mxu0
        %v584 = vadd.f32 %v370, %v583
        %v585 = vpop.f32.mrb[0].mxu0
        %v586 = vpop.f32.mrb[0].mxu0
        %v587 = vadd.f32 %v370, %v586
        %v588 = vpop.f32.mrb[0].mxu0
        %589 = vmatprep.mubr.bf16.mxu0 0
        %590 = vmatmul.mubr.bf16.gmra.mrb[0].mxu0 %v490
        %v591 = vpop.f32.mrb[0].mxu0
        %v592 = vadd.f32 %v370, %v591
        %v593 = vpop.f32.mrb[0].mxu0
        %v594 = vpop.f32.mrb[0].mxu0
        %v595 = vadd.f32 %v370, %v594
        %v596 = vpop.f32.mrb[0].mxu0
        %597 = vmatprep.mubr.bf16.mxu0 0
        %598 = vmatmul.mubr.bf16.gmra.mrb[0].mxu0 %v493
        %v599 = vpop.f32.mrb[0].mxu0
        %v600 = vadd.f32 %v370, %v599
        %v601 = vpop.f32.mrb[0].mxu0
        %v602 = vpop.f32.mrb[0].mxu0
        %v603 = vadd.f32 %v370, %v602
        %v604 = vpop.f32.mrb[0].mxu0
        %605 = vmatprep.mubr.bf16.mxu0 0
        %606 = vmatmul.mubr.bf16.gmra.mrb[0].mxu0 %v496
        %v607 = vpop.f32.mrb[0].mxu0
        %v608 = vadd.f32 %v370, %v607
        %v609 = vpop.f32.mrb[0].mxu0
        %v610 = vpop.f32.mrb[0].mxu0
        %v611 = vadd.f32 %v370, %v610
        %v612 = vpop.f32.mrb[0].mxu0
        %613 = vmatprep.mubr.bf16.mxu0 0
        %614 = vmatmul.mubr.bf16.gmra.mrb[0].mxu0 %v499
        %v615 = vpop.f32.mrb[0].mxu0
        %v616 = vadd.f32 %v370, %v615
        %v617 = vpop.f32.mrb[0].mxu0
        %v618 = vpop.f32.mrb[0].mxu0
        %v619 = vadd.f32 %v370, %v618
        %v620 = vpop.f32.mrb[0].mxu0
        %621 = vmatprep.mubr.bf16.mxu0 0
        %622 = vmatmul.mubr.bf16.gmra.mrb[0].mxu0 %v502
        %v623 = vpop.f32.mrb[0].mxu0
        %v624 = vadd.f32 %v370, %v623
        %v625 = vpop.f32.mrb[0].mxu0
        %v626 = vpop.f32.mrb[0].mxu0
        %v627 = vadd.f32 %v370, %v626
        %v628 = vpop.f32.mrb[0].mxu0
        %629 = vmatprep.mubr.bf16.mxu0 0
        %630 = vmatmul.mubr.bf16.gmra.mrb[0].mxu0 %v505
        %v631 = vpop.f32.mrb[0].mxu0
        %v632 = vadd.f32 %v370, %v631
        %v633 = vpop.f32.mrb[0].mxu0
        %v634 = vpop.f32.mrb[0].mxu0
        %v635 = vadd.f32 %v370, %v634
        %v636 = vpop.f32.mrb[0].mxu0
        %637 = vmatprep.mubr.bf16.mxu0 0
        %638 = vmatmul.mubr.bf16.gmra.mrb[0].mxu0 %v508
        %v639 = vpop.f32.mrb[0].mxu0
        %v640 = vadd.f32 %v370, %v639
        %v641 = vpop.f32.mrb[0].mxu0
        %v642 = vpop.f32.mrb[0].mxu0
        %v643 = vadd.f32 %v370, %v642
        %v644 = vpop.f32.mrb[0].mxu0
        %645 = vmatprep.mubr.bf16.mxu0 0
        %646 = vmatmul.mubr.bf16.gmra.mrb[0].mxu0 %v511
        %v647 = vpop.f32.mrb[0].mxu0
        %v648 = vadd.f32 %v370, %v647
        %v649 = vpop.f32.mrb[0].mxu0
        %v650 = vpop.f32.mrb[0].mxu0
        %v651 = vadd.f32 %v370, %v650
        %v652 = vpop.f32.mrb[0].mxu0
        %653 = vmatprep.mubr.bf16.mxu0 0
        %654 = vmatmul.mubr.bf16.gmra.mrb[0].mxu0 %v514
        %v655 = vpop.f32.mrb[0].mxu0
        %v656 = vadd.f32 %v370, %v655
        %v657 = vpop.f32.mrb[0].mxu0
        %v658 = vpop.f32.mrb[0].mxu0
        %v659 = vadd.f32 %v370, %v658
        %v660 = vpop.f32.mrb[0].mxu0
        %661 = vmatprep.mubr.bf16.mxu0 0
        %662 = vmatmul.mubr.bf16.gmra.mrb[0].mxu0 %v517
        %v663 = vpop.f32.mrb[0].mxu0
        %v664 = vadd.f32 %v370, %v663
        %v665 = vpop.f32.mrb[0].mxu0
        %v666 = vpop.f32.mrb[0].mxu0
        %v667 = vadd.f32 %v370, %v666
        %v668 = vpop.f32.mrb[0].mxu0
        %669 = vmatprep.mubr.bf16.mxu0 0
        %670 = vmatmul.mubr.bf16.gmra.mrb[0].mxu0 %v520
        %v671 = vpop.f32.mrb[0].mxu0
        %v672 = vadd.f32 %v370, %v671
        %v673 = vpop.f32.mrb[0].mxu0
        %v674 = vpop.f32.mrb[0].mxu0
        %v675 = vadd.f32 %v370, %v674
        %v676 = vpop.f32.mrb[0].mxu0
        %677 = vmatprep.mubr.bf16.mxu0 0
        %678 = vmatmul.mubr.bf16.gmra.mrb[0].mxu0 %v523
        %v679 = vpop.f32.mrb[0].mxu0
        %v680 = vadd.f32 %v370, %v679
        %v681 = vpop.f32.mrb[0].mxu0
        %v682 = vpop.f32.mrb[0].mxu0
        %v683 = vadd.f32 %v370, %v682
        %v684 = vpop.f32.mrb[0].mxu0
        %685 = vdwg.mxu0
        %v686 = vmax.f32 %v560, 0.0
        %v687 = vmax.f32 %v563, 0.0
        %v688 = vmax.f32 %v568, 0.0
        %v689 = vmax.f32 %v571, 0.0
        %v690 = vmax.f32 %v576, 0.0
        %v691 = vmax.f32 %v579, 0.0
        %v692 = vmax.f32 %v584, 0.0
        %v693 = vmax.f32 %v587, 0.0
        %v694 = vmax.f32 %v592, 0.0
        %v695 = vmax.f32 %v595, 0.0
        %v696 = vmax.f32 %v600, 0.0
        %v697 = vmax.f32 %v603, 0.0
        %v698 = vmax.f32 %v608, 0.0
        %v699 = vmax.f32 %v611, 0.0
        %v700 = vmax.f32 %v616, 0.0
        %v701 = vmax.f32 %v619, 0.0
        %v702 = vmax.f32 %v624, 0.0
        %v703 = vmax.f32 %v627, 0.0
        %v704 = vmax.f32 %v632, 0.0
        %v705 = vmax.f32 %v635, 0.0
        %v706 = vmax.f32 %v640, 0.0
        %v707 = vmax.f32 %v643, 0.0
        %v708 = vmax.f32 %v648, 0.0
        %v709 = vmax.f32 %v651, 0.0
        %v710 = vmax.f32 %v656, 0.0
        %v711 = vmax.f32 %v659, 0.0
        %v712 = vmax.f32 %v664, 0.0
        %v713 = vmax.f32 %v667, 0.0
        %v714 = vmax.f32 %v672, 0.0
        %v715 = vmax.f32 %v675, 0.0
        %v716 = vmax.f32 %v680, 0.0
        %v717 = vmax.f32 %v683, 0.0
        %v718 = vld [vmem:[%s316] sm:$0xf]
        %v719 = vld [vmem:[%s316 + $0x4] sm:$0xf]
        %v720 = vld [vmem:[%s4] sm:$0xf]
        %v721 = vld [vmem:[%s4 + $0x4] sm:$0xf]
        %v722 = vld [vmem:[%s4 + $0x8] sm:$0xf]
        %v723 = vld [vmem:[%s4 + $0xc] sm:$0xf]
        %v724 = vld [vmem:[%s5] sm:$0x1]
        %v726 = vlaneseq
        %v727 = vshrl.u32 %v726, 7
        %v728 = vsub.s32 0, %v727
        %v729 = vrot.slane %v724, %v728
        %v733 = vunpack.c.l.b16 %v718
        %v734 = vunpack.c.l.b16 %v719
        %v735 = vpack.c.b16 %v734, %v733
        %v740 = vunpack.c.l.b16 %v720
        %v741 = vunpack.c.l.b16 %v721
        %v742 = vunpack.c.l.b16 %v722
        %v743 = vunpack.c.l.b16 %v723
        %v744 = vpack.c.b16 %v741, %v740
        %v745 = vpack.c.b16 %v743, %v742
        %vm748 = vcmask 261120
        %v750 = vsel %vm748, %v735, 0
        %752 = vmatprep.subr.bf16.mxu0 0
        %753 = vmatpush1.bf16.msra.mxu0 %v744
        %754 = vmatprep.subr.bf16.mxu0 0
        %755 = vmatpush1.bf16.msra.mxu0 %v745
        %756 = vmatprep.subr.bf16.mxu0 0
        %757 = vmatpush1.bf16.msra.mxu0 0
        %758 = vmatprep.subr.bf16.mxu0 0
        %759 = vmatpush1.bf16.msra.mxu0 0
        %760 = vmatprep.subr.bf16.mxu0 0
        %761 = vmatpush1.bf16.msra.mxu0 0
        %762 = vmatprep.subr.bf16.mxu0 0
        %763 = vmatpush1.bf16.msra.mxu0 0
        %764 = vmatprep.subr.bf16.mxu0 0
        %765 = vmatpush1.bf16.msra.mxu0 0
        %766 = vmatprep.subr.bf16.mxu0 0
        %767 = vmatpush1.bf16.msra.mxu0 0
        %768 = vmatprep.subr.bf16.mxu0 0
        %769 = vmatpush1.bf16.msra.mxu0 0
        %770 = vmatprep.subr.bf16.mxu0 0
        %771 = vmatpush1.bf16.msra.mxu0 0
        %772 = vmatprep.subr.bf16.mxu0 0
        %773 = vmatpush1.bf16.msra.mxu0 0
        %774 = vmatprep.subr.bf16.mxu0 0
        %775 = vmatpush1.bf16.msra.mxu0 0
        %776 = vmatprep.subr.bf16.mxu0 0
        %777 = vmatpush1.bf16.msra.mxu0 0
        %778 = vmatprep.subr.bf16.mxu0 0
        %779 = vmatpush1.bf16.msra.mxu0 0
        %780 = vmatprep.subr.bf16.mxu0 0
        %781 = vmatpush1.bf16.msra.mxu0 0
        %782 = vmatprep.subr.bf16.mxu0 0
        %783 = vmatpush1.bf16.msra.mxu0 0
        %784 = vmatprep.mubr.bf16.mxu0 0
        %785 = vmatmul.mubr.bf16.gmra.mrb[0].mxu0 %v750
        %v786 = vpop.f32.mrb[0].mxu0
        %v787 = vadd.f32 %v729, %v786
        %v788 = vpop.f32.mrb[0].mxu0
        %v789 = vpop.f32.mrb[0].mxu0
        %v790 = vadd.f32 %v729, %v789
        %v791 = vpop.f32.mrb[0].mxu0
        %792 = vdwg.mxu0
        %v793 = vmax.f32 %v787, 0.0
        %v794 = vmax.f32 %v790, 0.0
        %v795 = vld [vmem:[%s6] sm:$0x1]
        %v797 = vlaneseq
        %v798 = vshrl.u32 %v797, 7
        %v799 = vsub.s32 0, %v798
        %v800 = vrot.slane %v795, %v799
        %v802 = vmul.f32 %v793, %v800
        %v803 = vmul.f32 %v794, %v800
        %v806 = vcombine.high %v802, %v802
        %v808 = vunpack.c.l.s4 1966171168
        %v809 = vunpack.c.0.s8 %v808
        %v810 = vlaneseq
        %v811 = vshrl.u32 %v810, 7
        %v812 = vsub.s32 %v809, %v811
        %v813 = vrot.slane %v802, %v812
        %v815 = vunpack.c.l.s4 1966171168
        %v816 = vunpack.c.0.s8 %v815
        %v817 = vlaneseq
        %v818 = vshrl.u32 %v817, 7
        %v819 = vsub.s32 %v816, %v818
        %v820 = vrot.slane %v806, %v819
        %v821 = vcombine.high %v813, %v813
        %v822 = vcombine.high %v820, %v820
        %v824 = vunpack.c.l.s4 1966171168
        %v825 = vunpack.c.0.s8 %v824
        %v826 = vlaneseq
        %v827 = vshrl.u32 %v826, 7
        %v828 = vsub.s32 %v825, %v827
        %v829 = vrot.slane %v813, %v828
        %v831 = vunpack.c.l.s4 1966171168
        %v832 = vunpack.c.0.s8 %v831
        %v833 = vlaneseq
        %v834 = vshrl.u32 %v833, 7
        %v835 = vsub.s32 %v832, %v834
        %v836 = vrot.slane %v820, %v835
        %v838 = vunpack.c.l.s4 1966171168
        %v839 = vunpack.c.0.s8 %v838
        %v840 = vlaneseq
        %v841 = vshrl.u32 %v840, 7
        %v842 = vsub.s32 %v839, %v841
        %v843 = vrot.slane %v821, %v842
        %v845 = vunpack.c.l.s4 1966171168
        %v846 = vunpack.c.0.s8 %v845
        %v847 = vlaneseq
        %v848 = vshrl.u32 %v847, 7
        %v849 = vsub.s32 %v846, %v848
        %v850 = vrot.slane %v822, %v849
        %v851 = vcombine.high %v829, %v829
        %v852 = vcombine.high %v836, %v836
        %v853 = vcombine.high %v843, %v843
        %v854 = vcombine.high %v850, %v850
        %v855 = vcombine.high %v803, %v803
        %v857 = vunpack.c.l.s4 1966171168
        %v858 = vunpack.c.0.s8 %v857
        %v859 = vlaneseq
        %v860 = vshrl.u32 %v859, 7
        %v861 = vsub.s32 %v858, %v860
        %v862 = vrot.slane %v803, %v861
        %v864 = vunpack.c.l.s4 1966171168
        %v865 = vunpack.c.0.s8 %v864
        %v866 = vlaneseq
        %v867 = vshrl.u32 %v866, 7
        %v868 = vsub.s32 %v865, %v867
        %v869 = vrot.slane %v855, %v868
        %v870 = vcombine.high %v862, %v862
        %v871 = vcombine.high %v869, %v869
        %v873 = vunpack.c.l.s4 1966171168
        %v874 = vunpack.c.0.s8 %v873
        %v875 = vlaneseq
        %v876 = vshrl.u32 %v875, 7
        %v877 = vsub.s32 %v874, %v876
        %v878 = vrot.slane %v862, %v877
        %v880 = vunpack.c.l.s4 1966171168
        %v881 = vunpack.c.0.s8 %v880
        %v882 = vlaneseq
        %v883 = vshrl.u32 %v882, 7
        %v884 = vsub.s32 %v881, %v883
        %v885 = vrot.slane %v869, %v884
        %v887 = vunpack.c.l.s4 1966171168
        %v888 = vunpack.c.0.s8 %v887
        %v889 = vlaneseq
        %v890 = vshrl.u32 %v889, 7
        %v891 = vsub.s32 %v888, %v890
        %v892 = vrot.slane %v870, %v891
        %v894 = vunpack.c.l.s4 1966171168
        %v895 = vunpack.c.0.s8 %v894
        %v896 = vlaneseq
        %v897 = vshrl.u32 %v896, 7
        %v898 = vsub.s32 %v895, %v897
        %v899 = vrot.slane %v871, %v898
        %v900 = vcombine.high %v878, %v878
        %v901 = vcombine.high %v885, %v885
        %v902 = vcombine.high %v892, %v892
        %v903 = vcombine.high %v899, %v899
        %v904 = vlaneseq
        %v905 = vshrl.u32 %v904, 7
        %v906 = vsub.s32 0, %v905
        %v907 = vrot.slane %v829, %v906
        %v908 = vlaneseq
        %v909 = vshrl.u32 %v908, 7
        %v910 = vsub.s32 0, %v909
        %v911 = vrot.slane %v843, %v910
        %v912 = vlaneseq
        %v913 = vshrl.u32 %v912, 7
        %v914 = vsub.s32 0, %v913
        %v915 = vrot.slane %v851, %v914
        %v916 = vlaneseq
        %v917 = vshrl.u32 %v916, 7
        %v918 = vsub.s32 0, %v917
        %v919 = vrot.slane %v853, %v918
        %v920 = vlaneseq
        %v921 = vshrl.u32 %v920, 7
        %v922 = vsub.s32 0, %v921
        %v923 = vrot.slane %v836, %v922
        %v924 = vlaneseq
        %v925 = vshrl.u32 %v924, 7
        %v926 = vsub.s32 0, %v925
        %v927 = vrot.slane %v850, %v926
        %v928 = vlaneseq
        %v929 = vshrl.u32 %v928, 7
        %v930 = vsub.s32 0, %v929
        %v931 = vrot.slane %v852, %v930
        %v932 = vlaneseq
        %v933 = vshrl.u32 %v932, 7
        %v934 = vsub.s32 0, %v933
        %v935 = vrot.slane %v854, %v934
        %v936 = vlaneseq
        %v937 = vshrl.u32 %v936, 7
        %v938 = vsub.s32 0, %v937
        %v939 = vrot.slane %v878, %v938
        %v940 = vlaneseq
        %v941 = vshrl.u32 %v940, 7
        %v942 = vsub.s32 0, %v941
        %v943 = vrot.slane %v892, %v942
        %v944 = vlaneseq
        %v945 = vshrl.u32 %v944, 7
        %v946 = vsub.s32 0, %v945
        %v947 = vrot.slane %v900, %v946
        %v948 = vlaneseq
        %v949 = vshrl.u32 %v948, 7
        %v950 = vsub.s32 0, %v949
        %v951 = vrot.slane %v902, %v950
        %v952 = vlaneseq
        %v953 = vshrl.u32 %v952, 7
        %v954 = vsub.s32 0, %v953
        %v955 = vrot.slane %v885, %v954
        %v956 = vlaneseq
        %v957 = vshrl.u32 %v956, 7
        %v958 = vsub.s32 0, %v957
        %v959 = vrot.slane %v899, %v958
        %v960 = vlaneseq
        %v961 = vshrl.u32 %v960, 7
        %v962 = vsub.s32 0, %v961
        %v963 = vrot.slane %v901, %v962
        %v964 = vlaneseq
        %v965 = vshrl.u32 %v964, 7
        %v966 = vsub.s32 0, %v965
        %v967 = vrot.slane %v903, %v966
        %v984 = vmul.f32 %v686, %v907
        %v985 = vmul.f32 %v687, %v907
        %v986 = vmul.f32 %v688, %v911
        %v987 = vmul.f32 %v689, %v911
        %v988 = vmul.f32 %v690, %v915
        %v989 = vmul.f32 %v691, %v915
        %v990 = vmul.f32 %v692, %v919
        %v991 = vmul.f32 %v693, %v919
        %v992 = vmul.f32 %v694, %v923
        %v993 = vmul.f32 %v695, %v923
        %v994 = vmul.f32 %v696, %v927
        %v995 = vmul.f32 %v697, %v927
        %v996 = vmul.f32 %v698, %v931
        %v997 = vmul.f32 %v699, %v931
        %v998 = vmul.f32 %v700, %v935
        %v999 = vmul.f32 %v701, %v935
        %v1000 = vmul.f32 %v702, %v939
        %v1001 = vmul.f32 %v703, %v939
        %v1002 = vmul.f32 %v704, %v943
        %v1003 = vmul.f32 %v705, %v943
        %v1004 = vmul.f32 %v706, %v947
        %v1005 = vmul.f32 %v707, %v947
        %v1006 = vmul.f32 %v708, %v951
        %v1007 = vmul.f32 %v709, %v951
        %v1008 = vmul.f32 %v710, %v955
        %v1009 = vmul.f32 %v711, %v955
        %v1010 = vmul.f32 %v712, %v959
        %v1011 = vmul.f32 %v713, %v959
        %v1012 = vmul.f32 %v714, %v963
        %v1013 = vmul.f32 %v715, %v963
        %v1014 = vmul.f32 %v716, %v967
        %v1015 = vmul.f32 %v717, %v967
        %v1016 = vsel %vm748, %v984, 0.0
        %1017 = vadd.xlane.f32.xlu0 %v1016
        %v1018 = vpop.xlane.xlu0 %1017
        %v1019 = vsel %vm748, %v985, 0.0
        %1020 = vadd.xlane.f32.xlu0 %v1019
        %v1021 = vpop.xlane.xlu0 %1020
        %v1022 = vsel %vm748, %v986, 0.0
        %1023 = vadd.xlane.f32.xlu0 %v1022
        %v1024 = vpop.xlane.xlu0 %1023
        %v1025 = vsel %vm748, %v987, 0.0
        %1026 = vadd.xlane.f32.xlu0 %v1025
        %v1027 = vpop.xlane.xlu0 %1026
        %v1028 = vsel %vm748, %v988, 0.0
        %1029 = vadd.xlane.f32.xlu0 %v1028
        %v1030 = vpop.xlane.xlu0 %1029
        %v1031 = vsel %vm748, %v989, 0.0
        %1032 = vadd.xlane.f32.xlu0 %v1031
        %v1033 = vpop.xlane.xlu0 %1032
        %v1034 = vsel %vm748, %v990, 0.0
        %1035 = vadd.xlane.f32.xlu0 %v1034
        %v1036 = vpop.xlane.xlu0 %1035
        %v1037 = vsel %vm748, %v991, 0.0
        %1038 = vadd.xlane.f32.xlu0 %v1037
        %v1039 = vpop.xlane.xlu0 %1038
        %v1040 = vsel %vm748, %v992, 0.0
        %1041 = vadd.xlane.f32.xlu0 %v1040
        %v1042 = vpop.xlane.xlu0 %1041
        %v1043 = vsel %vm748, %v993, 0.0
        %1044 = vadd.xlane.f32.xlu0 %v1043
        %v1045 = vpop.xlane.xlu0 %1044
        %v1046 = vsel %vm748, %v994, 0.0
        %1047 = vadd.xlane.f32.xlu0 %v1046
        %v1048 = vpop.xlane.xlu0 %1047
        %v1049 = vsel %vm748, %v995, 0.0
        %1050 = vadd.xlane.f32.xlu0 %v1049
        %v1051 = vpop.xlane.xlu0 %1050
        %v1052 = vsel %vm748, %v996, 0.0
        %1053 = vadd.xlane.f32.xlu0 %v1052
        %v1054 = vpop.xlane.xlu0 %1053
        %v1055 = vsel %vm748, %v997, 0.0
        %1056 = vadd.xlane.f32.xlu0 %v1055
        %v1057 = vpop.xlane.xlu0 %1056
        %v1058 = vsel %vm748, %v998, 0.0
        %1059 = vadd.xlane.f32.xlu0 %v1058
        %v1060 = vpop.xlane.xlu0 %1059
        %v1061 = vsel %vm748, %v999, 0.0
        %1062 = vadd.xlane.f32.xlu0 %v1061
        %v1063 = vpop.xlane.xlu0 %1062
        %v1064 = vsel %vm748, %v1000, 0.0
        %1065 = vadd.xlane.f32.xlu0 %v1064
        %v1066 = vpop.xlane.xlu0 %1065
        %v1067 = vsel %vm748, %v1001, 0.0
        %1068 = vadd.xlane.f32.xlu0 %v1067
        %v1069 = vpop.xlane.xlu0 %1068
        %v1070 = vsel %vm748, %v1002, 0.0
        %1071 = vadd.xlane.f32.xlu0 %v1070
        %v1072 = vpop.xlane.xlu0 %1071
        %v1073 = vsel %vm748, %v1003, 0.0
        %1074 = vadd.xlane.f32.xlu0 %v1073
        %v1075 = vpop.xlane.xlu0 %1074
        %v1076 = vsel %vm748, %v1004, 0.0
        %1077 = vadd.xlane.f32.xlu0 %v1076
        %v1078 = vpop.xlane.xlu0 %1077
        %v1079 = vsel %vm748, %v1005, 0.0
        %1080 = vadd.xlane.f32.xlu0 %v1079
        %v1081 = vpop.xlane.xlu0 %1080
        %v1082 = vsel %vm748, %v1006, 0.0
        %1083 = vadd.xlane.f32.xlu0 %v1082
        %v1084 = vpop.xlane.xlu0 %1083
        %v1085 = vsel %vm748, %v1007, 0.0
        %1086 = vadd.xlane.f32.xlu0 %v1085
        %v1087 = vpop.xlane.xlu0 %1086
        %v1088 = vsel %vm748, %v1008, 0.0
        %1089 = vadd.xlane.f32.xlu0 %v1088
        %v1090 = vpop.xlane.xlu0 %1089
        %v1091 = vsel %vm748, %v1009, 0.0
        %1092 = vadd.xlane.f32.xlu0 %v1091
        %v1093 = vpop.xlane.xlu0 %1092
        %v1094 = vsel %vm748, %v1010, 0.0
        %1095 = vadd.xlane.f32.xlu0 %v1094
        %v1096 = vpop.xlane.xlu0 %1095
        %v1097 = vsel %vm748, %v1011, 0.0
        %1098 = vadd.xlane.f32.xlu0 %v1097
        %v1099 = vpop.xlane.xlu0 %1098
        %v1100 = vsel %vm748, %v1012, 0.0
        %1101 = vadd.xlane.f32.xlu0 %v1100
        %v1102 = vpop.xlane.xlu0 %1101
        %v1103 = vsel %vm748, %v1013, 0.0
        %1104 = vadd.xlane.f32.xlu0 %v1103
        %v1105 = vpop.xlane.xlu0 %1104
        %v1106 = vsel %vm748, %v1014, 0.0
        %1107 = vadd.xlane.f32.xlu0 %v1106
        %v1108 = vpop.xlane.xlu0 %1107
        %v1109 = vsel %vm748, %v1015, 0.0
        %1110 = vadd.xlane.f32.xlu0 %v1109
        %v1111 = vpop.xlane.xlu0 %1110
        %v1144 = vlaneseq
        %v1145 = vand.u32 %v1144, 127
        %v1146 = vlaneseq
        %v1147 = vshrl.u32 %v1146, 7
        %v1148 = vsub.s32 %v1145, %v1147
        %v1149 = vrot.slane %v1018, %v1148
        %v1150 = vadd.s32 %v1145, 4294967288
        %v1151 = vlaneseq
        %v1152 = vshrl.u32 %v1151, 7
        %v1153 = vsub.s32 %v1150, %v1152
        %v1154 = vrot.slane %v1021, %v1153
        %vm1155 = vcmask 130112
        %v1156 = vsel %vm1155, %v1154, %v1149
        %v1157 = vlaneseq
        %v1158 = vshrl.u32 %v1157, 7
        %v1159 = vsub.s32 %v1145, %v1158
        %v1160 = vrot.slane %v1024, %v1159
        %v1161 = vlaneseq
        %v1162 = vshrl.u32 %v1161, 7
        %v1163 = vsub.s32 %v1150, %v1162
        %v1164 = vrot.slane %v1027, %v1163
        %v1165 = vsel %vm1155, %v1164, %v1160
        %v1166 = vlaneseq
        %v1167 = vshrl.u32 %v1166, 7
        %v1168 = vsub.s32 %v1145, %v1167
        %v1169 = vrot.slane %v1030, %v1168
        %v1170 = vlaneseq
        %v1171 = vshrl.u32 %v1170, 7
        %v1172 = vsub.s32 %v1150, %v1171
        %v1173 = vrot.slane %v1033, %v1172
        %v1174 = vsel %vm1155, %v1173, %v1169
        %v1175 = vlaneseq
        %v1176 = vshrl.u32 %v1175, 7
        %v1177 = vsub.s32 %v1145, %v1176
        %v1178 = vrot.slane %v1036, %v1177
        %v1179 = vlaneseq
        %v1180 = vshrl.u32 %v1179, 7
        %v1181 = vsub.s32 %v1150, %v1180
        %v1182 = vrot.slane %v1039, %v1181
        %v1183 = vsel %vm1155, %v1182, %v1178
        %v1184 = vlaneseq
        %v1185 = vshrl.u32 %v1184, 7
        %v1186 = vsub.s32 %v1145, %v1185
        %v1187 = vrot.slane %v1042, %v1186
        %v1188 = vlaneseq
        %v1189 = vshrl.u32 %v1188, 7
        %v1190 = vsub.s32 %v1150, %v1189
        %v1191 = vrot.slane %v1045, %v1190
        %v1192 = vsel %vm1155, %v1191, %v1187
        %v1193 = vlaneseq
        %v1194 = vshrl.u32 %v1193, 7
        %v1195 = vsub.s32 %v1145, %v1194
        %v1196 = vrot.slane %v1048, %v1195
        %v1197 = vlaneseq
        %v1198 = vshrl.u32 %v1197, 7
        %v1199 = vsub.s32 %v1150, %v1198
        %v1200 = vrot.slane %v1051, %v1199
        %v1201 = vsel %vm1155, %v1200, %v1196
        %v1202 = vlaneseq
        %v1203 = vshrl.u32 %v1202, 7
        %v1204 = vsub.s32 %v1145, %v1203
        %v1205 = vrot.slane %v1054, %v1204
        %v1206 = vlaneseq
        %v1207 = vshrl.u32 %v1206, 7
        %v1208 = vsub.s32 %v1150, %v1207
        %v1209 = vrot.slane %v1057, %v1208
        %v1210 = vsel %vm1155, %v1209, %v1205
        %v1211 = vlaneseq
        %v1212 = vshrl.u32 %v1211, 7
        %v1213 = vsub.s32 %v1145, %v1212
        %v1214 = vrot.slane %v1060, %v1213
        %v1215 = vlaneseq
        %v1216 = vshrl.u32 %v1215, 7
        %v1217 = vsub.s32 %v1150, %v1216
        %v1218 = vrot.slane %v1063, %v1217
        %v1219 = vsel %vm1155, %v1218, %v1214
        %v1220 = vlaneseq
        %v1221 = vshrl.u32 %v1220, 7
        %v1222 = vsub.s32 %v1145, %v1221
        %v1223 = vrot.slane %v1066, %v1222
        %v1224 = vlaneseq
        %v1225 = vshrl.u32 %v1224, 7
        %v1226 = vsub.s32 %v1150, %v1225
        %v1227 = vrot.slane %v1069, %v1226
        %v1228 = vsel %vm1155, %v1227, %v1223
        %v1229 = vlaneseq
        %v1230 = vshrl.u32 %v1229, 7
        %v1231 = vsub.s32 %v1145, %v1230
        %v1232 = vrot.slane %v1072, %v1231
        %v1233 = vlaneseq
        %v1234 = vshrl.u32 %v1233, 7
        %v1235 = vsub.s32 %v1150, %v1234
        %v1236 = vrot.slane %v1075, %v1235
        %v1237 = vsel %vm1155, %v1236, %v1232
        %v1238 = vlaneseq
        %v1239 = vshrl.u32 %v1238, 7
        %v1240 = vsub.s32 %v1145, %v1239
        %v1241 = vrot.slane %v1078, %v1240
        %v1242 = vlaneseq
        %v1243 = vshrl.u32 %v1242, 7
        %v1244 = vsub.s32 %v1150, %v1243
        %v1245 = vrot.slane %v1081, %v1244
        %v1246 = vsel %vm1155, %v1245, %v1241
        %v1247 = vlaneseq
        %v1248 = vshrl.u32 %v1247, 7
        %v1249 = vsub.s32 %v1145, %v1248
        %v1250 = vrot.slane %v1084, %v1249
        %v1251 = vlaneseq
        %v1252 = vshrl.u32 %v1251, 7
        %v1253 = vsub.s32 %v1150, %v1252
        %v1254 = vrot.slane %v1087, %v1253
        %v1255 = vsel %vm1155, %v1254, %v1250
        %v1256 = vlaneseq
        %v1257 = vshrl.u32 %v1256, 7
        %v1258 = vsub.s32 %v1145, %v1257
        %v1259 = vrot.slane %v1090, %v1258
        %v1260 = vlaneseq
        %v1261 = vshrl.u32 %v1260, 7
        %v1262 = vsub.s32 %v1150, %v1261
        %v1263 = vrot.slane %v1093, %v1262
        %v1264 = vsel %vm1155, %v1263, %v1259
        %v1265 = vlaneseq
        %v1266 = vshrl.u32 %v1265, 7
        %v1267 = vsub.s32 %v1145, %v1266
        %v1268 = vrot.slane %v1096, %v1267
        %v1269 = vlaneseq
        %v1270 = vshrl.u32 %v1269, 7
        %v1271 = vsub.s32 %v1150, %v1270
        %v1272 = vrot.slane %v1099, %v1271
        %v1273 = vsel %vm1155, %v1272, %v1268
        %v1274 = vlaneseq
        %v1275 = vshrl.u32 %v1274, 7
        %v1276 = vsub.s32 %v1145, %v1275
        %v1277 = vrot.slane %v1102, %v1276
        %v1278 = vlaneseq
        %v1279 = vshrl.u32 %v1278, 7
        %v1280 = vsub.s32 %v1150, %v1279
        %v1281 = vrot.slane %v1105, %v1280
        %v1282 = vsel %vm1155, %v1281, %v1277
        %v1283 = vlaneseq
        %v1284 = vshrl.u32 %v1283, 7
        %v1285 = vsub.s32 %v1145, %v1284
        %v1286 = vrot.slane %v1108, %v1285
        %v1287 = vlaneseq
        %v1288 = vshrl.u32 %v1287, 7
        %v1289 = vsub.s32 %v1150, %v1288
        %v1290 = vrot.slane %v1111, %v1289
        %v1291 = vsel %vm1155, %v1290, %v1286
        %vm1292 = vcmask 1041409
        %v1293 = vsel %vm1292, %v1165, %v1156
        %vm1294 = vcmask 1042434
        %v1295 = vsel %vm1294, %v1174, %v1293
        %vm1296 = vcmask 1043459
        %v1297 = vsel %vm1296, %v1183, %v1295
        %vm1298 = vcmask 1044484
        %v1299 = vsel %vm1298, %v1192, %v1297
        %vm1300 = vcmask 1045509
        %v1301 = vsel %vm1300, %v1201, %v1299
        %vm1302 = vcmask 1046534
        %v1303 = vsel %vm1302, %v1210, %v1301
        %vm1304 = vcmask 1047559
        %v1305 = vsel %vm1304, %v1219, %v1303
        %v1306 = vsel %vm1292, %v1237, %v1228
        %v1307 = vsel %vm1294, %v1246, %v1306
        %v1308 = vsel %vm1296, %v1255, %v1307
        %v1309 = vsel %vm1298, %v1264, %v1308
        %v1310 = vsel %vm1300, %v1273, %v1309
        %v1311 = vsel %vm1302, %v1282, %v1310
        %v1312 = vsel %vm1304, %v1291, %v1311
        %vm1315 = vcmask 130048
        %v1316 = vsel %vm1315, %v1305, -inf
        %1317 = vmax.xlane.f32.xlu0 %v1316
        %v1318 = vpop.xlane.xlu0 %1317
        %v1319 = vsel %vm1315, %v1312, -inf
        %1320 = vmax.xlane.f32.xlu0 %v1319
        %v1321 = vpop.xlane.xlu0 %1320
        %v1324 = vlaneseq
        %v1325 = vshrl.u32 %v1324, 7
        %v1326 = vsub.s32 0, %v1325
        %v1327 = vrot.slane %v1318, %v1326
        %v1328 = vlaneseq
        %v1329 = vshrl.u32 %v1328, 7
        %v1330 = vsub.s32 1, %v1329
        %v1331 = vrot.slane %v1318, %v1330
        %v1332 = vlaneseq
        %v1333 = vshrl.u32 %v1332, 7
        %v1334 = vsub.s32 2, %v1333
        %v1335 = vrot.slane %v1318, %v1334
        %v1336 = vlaneseq
        %v1337 = vshrl.u32 %v1336, 7
        %v1338 = vsub.s32 3, %v1337
        %v1339 = vrot.slane %v1318, %v1338
        %v1340 = vlaneseq
        %v1341 = vshrl.u32 %v1340, 7
        %v1342 = vsub.s32 4, %v1341
        %v1343 = vrot.slane %v1318, %v1342
        %v1344 = vlaneseq
        %v1345 = vshrl.u32 %v1344, 7
        %v1346 = vsub.s32 5, %v1345
        %v1347 = vrot.slane %v1318, %v1346
        %v1348 = vlaneseq
        %v1349 = vshrl.u32 %v1348, 7
        %v1350 = vsub.s32 6, %v1349
        %v1351 = vrot.slane %v1318, %v1350
        %v1352 = vlaneseq
        %v1353 = vshrl.u32 %v1352, 7
        %v1354 = vsub.s32 7, %v1353
        %v1355 = vrot.slane %v1318, %v1354
        %v1356 = vlaneseq
        %v1357 = vshrl.u32 %v1356, 7
        %v1358 = vsub.s32 0, %v1357
        %v1359 = vrot.slane %v1321, %v1358
        %v1360 = vlaneseq
        %v1361 = vshrl.u32 %v1360, 7
        %v1362 = vsub.s32 1, %v1361
        %v1363 = vrot.slane %v1321, %v1362
        %v1364 = vlaneseq
        %v1365 = vshrl.u32 %v1364, 7
        %v1366 = vsub.s32 2, %v1365
        %v1367 = vrot.slane %v1321, %v1366
        %v1368 = vlaneseq
        %v1369 = vshrl.u32 %v1368, 7
        %v1370 = vsub.s32 3, %v1369
        %v1371 = vrot.slane %v1321, %v1370
        %v1372 = vlaneseq
        %v1373 = vshrl.u32 %v1372, 7
        %v1374 = vsub.s32 4, %v1373
        %v1375 = vrot.slane %v1321, %v1374
        %v1376 = vlaneseq
        %v1377 = vshrl.u32 %v1376, 7
        %v1378 = vsub.s32 5, %v1377
        %v1379 = vrot.slane %v1321, %v1378
        %v1380 = vlaneseq
        %v1381 = vshrl.u32 %v1380, 7
        %v1382 = vsub.s32 6, %v1381
        %v1383 = vrot.slane %v1321, %v1382
        %v1384 = vlaneseq
        %v1385 = vshrl.u32 %v1384, 7
        %v1386 = vsub.s32 7, %v1385
        %v1387 = vrot.slane %v1321, %v1386
        %v1404 = vsub.f32 %v1018, %v1327
        %v1405 = vsub.f32 %v1021, %v1327
        %v1406 = vsub.f32 %v1024, %v1331
        %v1407 = vsub.f32 %v1027, %v1331
        %v1408 = vsub.f32 %v1030, %v1335
        %v1409 = vsub.f32 %v1033, %v1335
        %v1410 = vsub.f32 %v1036, %v1339
        %v1411 = vsub.f32 %v1039, %v1339
        %v1412 = vsub.f32 %v1042, %v1343
        %v1413 = vsub.f32 %v1045, %v1343
        %v1414 = vsub.f32 %v1048, %v1347
        %v1415 = vsub.f32 %v1051, %v1347
        %v1416 = vsub.f32 %v1054, %v1351
        %v1417 = vsub.f32 %v1057, %v1351
        %v1418 = vsub.f32 %v1060, %v1355
        %v1419 = vsub.f32 %v1063, %v1355
        %v1420 = vsub.f32 %v1066, %v1359
        %v1421 = vsub.f32 %v1069, %v1359
        %v1422 = vsub.f32 %v1072, %v1363
        %v1423 = vsub.f32 %v1075, %v1363
        %v1424 = vsub.f32 %v1078, %v1367
        %v1425 = vsub.f32 %v1081, %v1367
        %v1426 = vsub.f32 %v1084, %v1371
        %v1427 = vsub.f32 %v1087, %v1371
        %v1428 = vsub.f32 %v1090, %v1375
        %v1429 = vsub.f32 %v1093, %v1375
        %v1430 = vsub.f32 %v1096, %v1379
        %v1431 = vsub.f32 %v1099, %v1379
        %v1432 = vsub.f32 %v1102, %v1383
        %v1433 = vsub.f32 %v1105, %v1383
        %v1434 = vsub.f32 %v1108, %v1387
        %v1435 = vsub.f32 %v1111, %v1387
        %v1436 = vmul.f32 %v1404, 1.442695
        %v1437 = vpow.pop %v1436
        %v1438 = vmul.f32 %v1405, 1.442695
        %v1439 = vpow.pop %v1438
        %v1440 = vmul.f32 %v1406, 1.442695
        %v1441 = vpow.pop %v1440
        %v1442 = vmul.f32 %v1407, 1.442695
        %v1443 = vpow.pop %v1442
        %v1444 = vmul.f32 %v1408, 1.442695
        %v1445 = vpow.pop %v1444
        %v1446 = vmul.f32 %v1409, 1.442695
        %v1447 = vpow.pop %v1446
        %v1448 = vmul.f32 %v1410, 1.442695
        %v1449 = vpow.pop %v1448
        %v1450 = vmul.f32 %v1411, 1.442695
        %v1451 = vpow.pop %v1450
        %v1452 = vmul.f32 %v1412, 1.442695
        %v1453 = vpow.pop %v1452
        %v1454 = vmul.f32 %v1413, 1.442695
        %v1455 = vpow.pop %v1454
        %v1456 = vmul.f32 %v1414, 1.442695
        %v1457 = vpow.pop %v1456
        %v1458 = vmul.f32 %v1415, 1.442695
        %v1459 = vpow.pop %v1458
        %v1460 = vmul.f32 %v1416, 1.442695
        %v1461 = vpow.pop %v1460
        %v1462 = vmul.f32 %v1417, 1.442695
        %v1463 = vpow.pop %v1462
        %v1464 = vmul.f32 %v1418, 1.442695
        %v1465 = vpow.pop %v1464
        %v1466 = vmul.f32 %v1419, 1.442695
        %v1467 = vpow.pop %v1466
        %v1468 = vmul.f32 %v1420, 1.442695
        %v1469 = vpow.pop %v1468
        %v1470 = vmul.f32 %v1421, 1.442695
        %v1471 = vpow.pop %v1470
        %v1472 = vmul.f32 %v1422, 1.442695
        %v1473 = vpow.pop %v1472
        %v1474 = vmul.f32 %v1423, 1.442695
        %v1475 = vpow.pop %v1474
        %v1476 = vmul.f32 %v1424, 1.442695
        %v1477 = vpow.pop %v1476
        %v1478 = vmul.f32 %v1425, 1.442695
        %v1479 = vpow.pop %v1478
        %v1480 = vmul.f32 %v1426, 1.442695
        %v1481 = vpow.pop %v1480
        %v1482 = vmul.f32 %v1427, 1.442695
        %v1483 = vpow.pop %v1482
        %v1484 = vmul.f32 %v1428, 1.442695
        %v1485 = vpow.pop %v1484
        %v1486 = vmul.f32 %v1429, 1.442695
        %v1487 = vpow.pop %v1486
        %v1488 = vmul.f32 %v1430, 1.442695
        %v1489 = vpow.pop %v1488
        %v1490 = vmul.f32 %v1431, 1.442695
        %v1491 = vpow.pop %v1490
        %v1492 = vmul.f32 %v1432, 1.442695
        %v1493 = vpow.pop %v1492
        %v1494 = vmul.f32 %v1433, 1.442695
        %v1495 = vpow.pop %v1494
        %v1496 = vmul.f32 %v1434, 1.442695
        %v1497 = vpow.pop %v1496
        %v1498 = vmul.f32 %v1435, 1.442695
        %v1499 = vpow.pop %v1498
        %1532 = vset.pattern.permute.xlu0 0
        %1533 = vperm.xlu0 %1532, %v1437
        %v1534 = vpop.permute.xlu0 %1533
        %1535 = vset.pattern.permute.xlu0 0
        %1536 = vperm.xlu0 %1535, %v1439
        %v1537 = vpop.permute.xlu0 %1536
        %1538 = vset.pattern.permute.xlu0 0
        %1539 = vperm.xlu0 %1538, %v1441
        %v1540 = vpop.permute.xlu0 %1539
        %1541 = vset.pattern.permute.xlu0 0
        %1542 = vperm.xlu0 %1541, %v1443
        %v1543 = vpop.permute.xlu0 %1542
        %1544 = vset.pattern.permute.xlu0 0
        %1545 = vperm.xlu0 %1544, %v1445
        %v1546 = vpop.permute.xlu0 %1545
        %1547 = vset.pattern.permute.xlu0 0
        %1548 = vperm.xlu0 %1547, %v1447
        %v1549 = vpop.permute.xlu0 %1548
        %1550 = vset.pattern.permute.xlu0 0
        %1551 = vperm.xlu0 %1550, %v1449
        %v1552 = vpop.permute.xlu0 %1551
        %1553 = vset.pattern.permute.xlu0 0
        %1554 = vperm.xlu0 %1553, %v1451
        %v1555 = vpop.permute.xlu0 %1554
        %1556 = vset.pattern.permute.xlu0 0
        %1557 = vperm.xlu0 %1556, %v1453
        %v1558 = vpop.permute.xlu0 %1557
        %1559 = vset.pattern.permute.xlu0 0
        %1560 = vperm.xlu0 %1559, %v1455
        %v1561 = vpop.permute.xlu0 %1560
        %1562 = vset.pattern.permute.xlu0 0
        %1563 = vperm.xlu0 %1562, %v1457
        %v1564 = vpop.permute.xlu0 %1563
        %1565 = vset.pattern.permute.xlu0 0
        %1566 = vperm.xlu0 %1565, %v1459
        %v1567 = vpop.permute.xlu0 %1566
        %1568 = vset.pattern.permute.xlu0 0
        %1569 = vperm.xlu0 %1568, %v1461
        %v1570 = vpop.permute.xlu0 %1569
        %1571 = vset.pattern.permute.xlu0 0
        %1572 = vperm.xlu0 %1571, %v1463
        %v1573 = vpop.permute.xlu0 %1572
        %1574 = vset.pattern.permute.xlu0 0
        %1575 = vperm.xlu0 %1574, %v1465
        %v1576 = vpop.permute.xlu0 %1575
        %1577 = vset.pattern.permute.xlu0 0
        %1578 = vperm.xlu0 %1577, %v1467
        %v1579 = vpop.permute.xlu0 %1578
        %1580 = vset.pattern.permute.xlu0 0
        %1581 = vperm.xlu0 %1580, %v1469
        %v1582 = vpop.permute.xlu0 %1581
        %1583 = vset.pattern.permute.xlu0 0
        %1584 = vperm.xlu0 %1583, %v1471
        %v1585 = vpop.permute.xlu0 %1584
        %1586 = vset.pattern.permute.xlu0 0
        %1587 = vperm.xlu0 %1586, %v1473
        %v1588 = vpop.permute.xlu0 %1587
        %1589 = vset.pattern.permute.xlu0 0
        %1590 = vperm.xlu0 %1589, %v1475
        %v1591 = vpop.permute.xlu0 %1590
        %1592 = vset.pattern.permute.xlu0 0
        %1593 = vperm.xlu0 %1592, %v1477
        %v1594 = vpop.permute.xlu0 %1593
        %1595 = vset.pattern.permute.xlu0 0
        %1596 = vperm.xlu0 %1595, %v1479
        %v1597 = vpop.permute.xlu0 %1596
        %1598 = vset.pattern.permute.xlu0 0
        %1599 = vperm.xlu0 %1598, %v1481
        %v1600 = vpop.permute.xlu0 %1599
        %1601 = vset.pattern.permute.xlu0 0
        %1602 = vperm.xlu0 %1601, %v1483
        %v1603 = vpop.permute.xlu0 %1602
        %1604 = vset.pattern.permute.xlu0 0
        %1605 = vperm.xlu0 %1604, %v1485
        %v1606 = vpop.permute.xlu0 %1605
        %1607 = vset.pattern.permute.xlu0 0
        %1608 = vperm.xlu0 %1607, %v1487
        %v1609 = vpop.permute.xlu0 %1608
        %1610 = vset.pattern.permute.xlu0 0
        %1611 = vperm.xlu0 %1610, %v1489
        %v1612 = vpop.permute.xlu0 %1611
        %1613 = vset.pattern.permute.xlu0 0
        %1614 = vperm.xlu0 %1613, %v1491
        %v1615 = vpop.permute.xlu0 %1614
        %1616 = vset.pattern.permute.xlu0 0
        %1617 = vperm.xlu0 %1616, %v1493
        %v1618 = vpop.permute.xlu0 %1617
        %1619 = vset.pattern.permute.xlu0 0
        %1620 = vperm.xlu0 %1619, %v1495
        %v1621 = vpop.permute.xlu0 %1620
        %1622 = vset.pattern.permute.xlu0 0
        %1623 = vperm.xlu0 %1622, %v1497
        %v1624 = vpop.permute.xlu0 %1623
        %1625 = vset.pattern.permute.xlu0 0
        %1626 = vperm.xlu0 %1625, %v1499
        %v1627 = vpop.permute.xlu0 %1626
        %v1628 = vlaneseq
        %v1629 = vshrl.u32 %v1628, 7
        %v1630 = vsub.s32 %v1145, %v1629
        %v1631 = vrot.slane %v1534, %v1630
        %v1632 = vlaneseq
        %v1633 = vshrl.u32 %v1632, 7
        %v1634 = vsub.s32 %v1150, %v1633
        %v1635 = vrot.slane %v1537, %v1634
        %v1636 = vsel %vm1155, %v1635, %v1631
        %v1637 = vlaneseq
        %v1638 = vshrl.u32 %v1637, 7
        %v1639 = vsub.s32 %v1145, %v1638
        %v1640 = vrot.slane %v1540, %v1639
        %v1641 = vlaneseq
        %v1642 = vshrl.u32 %v1641, 7
        %v1643 = vsub.s32 %v1150, %v1642
        %v1644 = vrot.slane %v1543, %v1643
        %v1645 = vsel %vm1155, %v1644, %v1640
        %v1646 = vlaneseq
        %v1647 = vshrl.u32 %v1646, 7
        %v1648 = vsub.s32 %v1145, %v1647
        %v1649 = vrot.slane %v1546, %v1648
        %v1650 = vlaneseq
        %v1651 = vshrl.u32 %v1650, 7
        %v1652 = vsub.s32 %v1150, %v1651
        %v1653 = vrot.slane %v1549, %v1652
        %v1654 = vsel %vm1155, %v1653, %v1649
        %v1655 = vlaneseq
        %v1656 = vshrl.u32 %v1655, 7
        %v1657 = vsub.s32 %v1145, %v1656
        %v1658 = vrot.slane %v1552, %v1657
        %v1659 = vlaneseq
        %v1660 = vshrl.u32 %v1659, 7
        %v1661 = vsub.s32 %v1150, %v1660
        %v1662 = vrot.slane %v1555, %v1661
        %v1663 = vsel %vm1155, %v1662, %v1658
        %v1664 = vlaneseq
        %v1665 = vshrl.u32 %v1664, 7
        %v1666 = vsub.s32 %v1145, %v1665
        %v1667 = vrot.slane %v1558, %v1666
        %v1668 = vlaneseq
        %v1669 = vshrl.u32 %v1668, 7
        %v1670 = vsub.s32 %v1150, %v1669
        %v1671 = vrot.slane %v1561, %v1670
        %v1672 = vsel %vm1155, %v1671, %v1667
        %v1673 = vlaneseq
        %v1674 = vshrl.u32 %v1673, 7
        %v1675 = vsub.s32 %v1145, %v1674
        %v1676 = vrot.slane %v1564, %v1675
        %v1677 = vlaneseq
        %v1678 = vshrl.u32 %v1677, 7
        %v1679 = vsub.s32 %v1150, %v1678
        %v1680 = vrot.slane %v1567, %v1679
        %v1681 = vsel %vm1155, %v1680, %v1676
        %v1682 = vlaneseq
        %v1683 = vshrl.u32 %v1682, 7
        %v1684 = vsub.s32 %v1145, %v1683
        %v1685 = vrot.slane %v1570, %v1684
        %v1686 = vlaneseq
        %v1687 = vshrl.u32 %v1686, 7
        %v1688 = vsub.s32 %v1150, %v1687
        %v1689 = vrot.slane %v1573, %v1688
        %v1690 = vsel %vm1155, %v1689, %v1685
        %v1691 = vlaneseq
        %v1692 = vshrl.u32 %v1691, 7
        %v1693 = vsub.s32 %v1145, %v1692
        %v1694 = vrot.slane %v1576, %v1693
        %v1695 = vlaneseq
        %v1696 = vshrl.u32 %v1695, 7
        %v1697 = vsub.s32 %v1150, %v1696
        %v1698 = vrot.slane %v1579, %v1697
        %v1699 = vsel %vm1155, %v1698, %v1694
        %v1700 = vlaneseq
        %v1701 = vshrl.u32 %v1700, 7
        %v1702 = vsub.s32 %v1145, %v1701
        %v1703 = vrot.slane %v1582, %v1702
        %v1704 = vlaneseq
        %v1705 = vshrl.u32 %v1704, 7
        %v1706 = vsub.s32 %v1150, %v1705
        %v1707 = vrot.slane %v1585, %v1706
        %v1708 = vsel %vm1155, %v1707, %v1703
        %v1709 = vlaneseq
        %v1710 = vshrl.u32 %v1709, 7
        %v1711 = vsub.s32 %v1145, %v1710
        %v1712 = vrot.slane %v1588, %v1711
        %v1713 = vlaneseq
        %v1714 = vshrl.u32 %v1713, 7
        %v1715 = vsub.s32 %v1150, %v1714
        %v1716 = vrot.slane %v1591, %v1715
        %v1717 = vsel %vm1155, %v1716, %v1712
        %v1718 = vlaneseq
        %v1719 = vshrl.u32 %v1718, 7
        %v1720 = vsub.s32 %v1145, %v1719
        %v1721 = vrot.slane %v1594, %v1720
        %v1722 = vlaneseq
        %v1723 = vshrl.u32 %v1722, 7
        %v1724 = vsub.s32 %v1150, %v1723
        %v1725 = vrot.slane %v1597, %v1724
        %v1726 = vsel %vm1155, %v1725, %v1721
        %v1727 = vlaneseq
        %v1728 = vshrl.u32 %v1727, 7
        %v1729 = vsub.s32 %v1145, %v1728
        %v1730 = vrot.slane %v1600, %v1729
        %v1731 = vlaneseq
        %v1732 = vshrl.u32 %v1731, 7
        %v1733 = vsub.s32 %v1150, %v1732
        %v1734 = vrot.slane %v1603, %v1733
        %v1735 = vsel %vm1155, %v1734, %v1730
        %v1736 = vlaneseq
        %v1737 = vshrl.u32 %v1736, 7
        %v1738 = vsub.s32 %v1145, %v1737
        %v1739 = vrot.slane %v1606, %v1738
        %v1740 = vlaneseq
        %v1741 = vshrl.u32 %v1740, 7
        %v1742 = vsub.s32 %v1150, %v1741
        %v1743 = vrot.slane %v1609, %v1742
        %v1744 = vsel %vm1155, %v1743, %v1739
        %v1745 = vlaneseq
        %v1746 = vshrl.u32 %v1745, 7
        %v1747 = vsub.s32 %v1145, %v1746
        %v1748 = vrot.slane %v1612, %v1747
        %v1749 = vlaneseq
        %v1750 = vshrl.u32 %v1749, 7
        %v1751 = vsub.s32 %v1150, %v1750
        %v1752 = vrot.slane %v1615, %v1751
        %v1753 = vsel %vm1155, %v1752, %v1748
        %v1754 = vlaneseq
        %v1755 = vshrl.u32 %v1754, 7
        %v1756 = vsub.s32 %v1145, %v1755
        %v1757 = vrot.slane %v1618, %v1756
        %v1758 = vlaneseq
        %v1759 = vshrl.u32 %v1758, 7
        %v1760 = vsub.s32 %v1150, %v1759
        %v1761 = vrot.slane %v1621, %v1760
        %v1762 = vsel %vm1155, %v1761, %v1757
        %v1763 = vlaneseq
        %v1764 = vshrl.u32 %v1763, 7
        %v1765 = vsub.s32 %v1145, %v1764
        %v1766 = vrot.slane %v1624, %v1765
        %v1767 = vlaneseq
        %v1768 = vshrl.u32 %v1767, 7
        %v1769 = vsub.s32 %v1150, %v1768
        %v1770 = vrot.slane %v1627, %v1769
        %v1771 = vsel %vm1155, %v1770, %v1766
        %v1772 = vsel %vm1292, %v1645, %v1636
        %v1773 = vsel %vm1294, %v1654, %v1772
        %v1774 = vsel %vm1296, %v1663, %v1773
        %v1775 = vsel %vm1298, %v1672, %v1774
        %v1776 = vsel %vm1300, %v1681, %v1775
        %v1777 = vsel %vm1302, %v1690, %v1776
        %v1778 = vsel %vm1304, %v1699, %v1777
        %v1779 = vsel %vm1292, %v1717, %v1708
        %v1780 = vsel %vm1294, %v1726, %v1779
        %v1781 = vsel %vm1296, %v1735, %v1780
        %v1782 = vsel %vm1298, %v1744, %v1781
        %v1783 = vsel %vm1300, %v1753, %v1782
        %v1784 = vsel %vm1302, %v1762, %v1783
        %v1785 = vsel %vm1304, %v1771, %v1784
        %v1788 = vsel %vm1315, %v1778, 0.0
        %1789 = vadd.xlane.f32.xlu0 %v1788
        %v1790 = vpop.xlane.xlu0 %1789
        %v1791 = vsel %vm1315, %v1785, 0.0
        %1792 = vadd.xlane.f32.xlu0 %v1791
        %v1793 = vpop.xlane.xlu0 %1792
        %v1796 = vlaneseq
        %v1797 = vshrl.u32 %v1796, 7
        %v1798 = vsub.s32 0, %v1797
        %v1799 = vrot.slane %v1790, %v1798
        %v1800 = vlaneseq
        %v1801 = vshrl.u32 %v1800, 7
        %v1802 = vsub.s32 1, %v1801
        %v1803 = vrot.slane %v1790, %v1802
        %v1804 = vlaneseq
        %v1805 = vshrl.u32 %v1804, 7
        %v1806 = vsub.s32 2, %v1805
        %v1807 = vrot.slane %v1790, %v1806
        %v1808 = vlaneseq
        %v1809 = vshrl.u32 %v1808, 7
        %v1810 = vsub.s32 3, %v1809
        %v1811 = vrot.slane %v1790, %v1810
        %v1812 = vlaneseq
        %v1813 = vshrl.u32 %v1812, 7
        %v1814 = vsub.s32 4, %v1813
        %v1815 = vrot.slane %v1790, %v1814
        %v1816 = vlaneseq
        %v1817 = vshrl.u32 %v1816, 7
        %v1818 = vsub.s32 5, %v1817
        %v1819 = vrot.slane %v1790, %v1818
        %v1820 = vlaneseq
        %v1821 = vshrl.u32 %v1820, 7
        %v1822 = vsub.s32 6, %v1821
        %v1823 = vrot.slane %v1790, %v1822
        %v1824 = vlaneseq
        %v1825 = vshrl.u32 %v1824, 7
        %v1826 = vsub.s32 7, %v1825
        %v1827 = vrot.slane %v1790, %v1826
        %v1828 = vlaneseq
        %v1829 = vshrl.u32 %v1828, 7
        %v1830 = vsub.s32 0, %v1829
        %v1831 = vrot.slane %v1793, %v1830
        %v1832 = vlaneseq
        %v1833 = vshrl.u32 %v1832, 7
        %v1834 = vsub.s32 1, %v1833
        %v1835 = vrot.slane %v1793, %v1834
        %v1836 = vlaneseq
        %v1837 = vshrl.u32 %v1836, 7
        %v1838 = vsub.s32 2, %v1837
        %v1839 = vrot.slane %v1793, %v1838
        %v1840 = vlaneseq
        %v1841 = vshrl.u32 %v1840, 7
        %v1842 = vsub.s32 3, %v1841
        %v1843 = vrot.slane %v1793, %v1842
        %v1844 = vlaneseq
        %v1845 = vshrl.u32 %v1844, 7
        %v1846 = vsub.s32 4, %v1845
        %v1847 = vrot.slane %v1793, %v1846
        %v1848 = vlaneseq
        %v1849 = vshrl.u32 %v1848, 7
        %v1850 = vsub.s32 5, %v1849
        %v1851 = vrot.slane %v1793, %v1850
        %v1852 = vlaneseq
        %v1853 = vshrl.u32 %v1852, 7
        %v1854 = vsub.s32 6, %v1853
        %v1855 = vrot.slane %v1793, %v1854
        %v1856 = vlaneseq
        %v1857 = vshrl.u32 %v1856, 7
        %v1858 = vsub.s32 7, %v1857
        %v1859 = vrot.slane %v1793, %v1858
        %v1876 = vrcp.pop %v1799
        %v1877 = vmul.f32 %v1437, %v1876
        %v1878 = vmul.f32 %v1439, %v1876
        %v1879 = vrcp.pop %v1803
        %v1880 = vmul.f32 %v1441, %v1879
        %v1881 = vmul.f32 %v1443, %v1879
        %v1882 = vrcp.pop %v1807
        %v1883 = vmul.f32 %v1445, %v1882
        %v1884 = vmul.f32 %v1447, %v1882
        %v1885 = vrcp.pop %v1811
        %v1886 = vmul.f32 %v1449, %v1885
        %v1887 = vmul.f32 %v1451, %v1885
        %v1888 = vrcp.pop %v1815
        %v1889 = vmul.f32 %v1453, %v1888
        %v1890 = vmul.f32 %v1455, %v1888
        %v1891 = vrcp.pop %v1819
        %v1892 = vmul.f32 %v1457, %v1891
        %v1893 = vmul.f32 %v1459, %v1891
        %v1894 = vrcp.pop %v1823
        %v1895 = vmul.f32 %v1461, %v1894
        %v1896 = vmul.f32 %v1463, %v1894
        %v1897 = vrcp.pop %v1827
        %v1898 = vmul.f32 %v1465, %v1897
        %v1899 = vmul.f32 %v1467, %v1897
        %v1900 = vrcp.pop %v1831
        %v1901 = vmul.f32 %v1469, %v1900
        %v1902 = vmul.f32 %v1471, %v1900
        %v1903 = vrcp.pop %v1835
        %v1904 = vmul.f32 %v1473, %v1903
        %v1905 = vmul.f32 %v1475, %v1903
        %v1906 = vrcp.pop %v1839
        %v1907 = vmul.f32 %v1477, %v1906
        %v1908 = vmul.f32 %v1479, %v1906
        %v1909 = vrcp.pop %v1843
        %v1910 = vmul.f32 %v1481, %v1909
        %v1911 = vmul.f32 %v1483, %v1909
        %v1912 = vrcp.pop %v1847
        %v1913 = vmul.f32 %v1485, %v1912
        %v1914 = vmul.f32 %v1487, %v1912
        %v1915 = vrcp.pop %v1851
        %v1916 = vmul.f32 %v1489, %v1915
        %v1917 = vmul.f32 %v1491, %v1915
        %v1918 = vrcp.pop %v1855
        %v1919 = vmul.f32 %v1493, %v1918
        %v1920 = vmul.f32 %v1495, %v1918
        %v1921 = vrcp.pop %v1859
        %v1922 = vmul.f32 %v1497, %v1921
        %v1923 = vmul.f32 %v1499, %v1921
        %1956 = vset.pattern.permute.xlu0 0
        %1957 = vperm.xlu0 %1956, %v1877
        %v1958 = vpop.permute.xlu0 %1957
        %1959 = vset.pattern.permute.xlu0 0
        %1960 = vperm.xlu0 %1959, %v1878
        %v1961 = vpop.permute.xlu0 %1960
        %1962 = vset.pattern.permute.xlu0 0
        %1963 = vperm.xlu0 %1962, %v1880
        %v1964 = vpop.permute.xlu0 %1963
        %1965 = vset.pattern.permute.xlu0 0
        %1966 = vperm.xlu0 %1965, %v1881
        %v1967 = vpop.permute.xlu0 %1966
        %1968 = vset.pattern.permute.xlu0 0
        %1969 = vperm.xlu0 %1968, %v1883
        %v1970 = vpop.permute.xlu0 %1969
        %1971 = vset.pattern.permute.xlu0 0
        %1972 = vperm.xlu0 %1971, %v1884
        %v1973 = vpop.permute.xlu0 %1972
        %1974 = vset.pattern.permute.xlu0 0
        %1975 = vperm.xlu0 %1974, %v1886
        %v1976 = vpop.permute.xlu0 %1975
        %1977 = vset.pattern.permute.xlu0 0
        %1978 = vperm.xlu0 %1977, %v1887
        %v1979 = vpop.permute.xlu0 %1978
        %1980 = vset.pattern.permute.xlu0 0
        %1981 = vperm.xlu0 %1980, %v1889
        %v1982 = vpop.permute.xlu0 %1981
        %1983 = vset.pattern.permute.xlu0 0
        %1984 = vperm.xlu0 %1983, %v1890
        %v1985 = vpop.permute.xlu0 %1984
        %1986 = vset.pattern.permute.xlu0 0
        %1987 = vperm.xlu0 %1986, %v1892
        %v1988 = vpop.permute.xlu0 %1987
        %1989 = vset.pattern.permute.xlu0 0
        %1990 = vperm.xlu0 %1989, %v1893
        %v1991 = vpop.permute.xlu0 %1990
        %1992 = vset.pattern.permute.xlu0 0
        %1993 = vperm.xlu0 %1992, %v1895
        %v1994 = vpop.permute.xlu0 %1993
        %1995 = vset.pattern.permute.xlu0 0
        %1996 = vperm.xlu0 %1995, %v1896
        %v1997 = vpop.permute.xlu0 %1996
        %1998 = vset.pattern.permute.xlu0 0
        %1999 = vperm.xlu0 %1998, %v1898
        %v2000 = vpop.permute.xlu0 %1999
        %2001 = vset.pattern.permute.xlu0 0
        %2002 = vperm.xlu0 %2001, %v1899
        %v2003 = vpop.permute.xlu0 %2002
        %2004 = vset.pattern.permute.xlu0 0
        %2005 = vperm.xlu0 %2004, %v1901
        %v2006 = vpop.permute.xlu0 %2005
        %2007 = vset.pattern.permute.xlu0 0
        %2008 = vperm.xlu0 %2007, %v1902
        %v2009 = vpop.permute.xlu0 %2008
        %2010 = vset.pattern.permute.xlu0 0
        %2011 = vperm.xlu0 %2010, %v1904
        %v2012 = vpop.permute.xlu0 %2011
        %2013 = vset.pattern.permute.xlu0 0
        %2014 = vperm.xlu0 %2013, %v1905
        %v2015 = vpop.permute.xlu0 %2014
        %2016 = vset.pattern.permute.xlu0 0
        %2017 = vperm.xlu0 %2016, %v1907
        %v2018 = vpop.permute.xlu0 %2017
        %2019 = vset.pattern.permute.xlu0 0
        %2020 = vperm.xlu0 %2019, %v1908
        %v2021 = vpop.permute.xlu0 %2020
        %2022 = vset.pattern.permute.xlu0 0
        %2023 = vperm.xlu0 %2022, %v1910
        %v2024 = vpop.permute.xlu0 %2023
        %2025 = vset.pattern.permute.xlu0 0
        %2026 = vperm.xlu0 %2025, %v1911
        %v2027 = vpop.permute.xlu0 %2026
        %2028 = vset.pattern.permute.xlu0 0
        %2029 = vperm.xlu0 %2028, %v1913
        %v2030 = vpop.permute.xlu0 %2029
        %2031 = vset.pattern.permute.xlu0 0
        %2032 = vperm.xlu0 %2031, %v1914
        %v2033 = vpop.permute.xlu0 %2032
        %2034 = vset.pattern.permute.xlu0 0
        %2035 = vperm.xlu0 %2034, %v1916
        %v2036 = vpop.permute.xlu0 %2035
        %2037 = vset.pattern.permute.xlu0 0
        %2038 = vperm.xlu0 %2037, %v1917
        %v2039 = vpop.permute.xlu0 %2038
        %2040 = vset.pattern.permute.xlu0 0
        %2041 = vperm.xlu0 %2040, %v1919
        %v2042 = vpop.permute.xlu0 %2041
        %2043 = vset.pattern.permute.xlu0 0
        %2044 = vperm.xlu0 %2043, %v1920
        %v2045 = vpop.permute.xlu0 %2044
        %2046 = vset.pattern.permute.xlu0 0
        %2047 = vperm.xlu0 %2046, %v1922
        %v2048 = vpop.permute.xlu0 %2047
        %2049 = vset.pattern.permute.xlu0 0
        %2050 = vperm.xlu0 %2049, %v1923
        %v2051 = vpop.permute.xlu0 %2050
        %v2052 = vlaneseq
        %v2053 = vshrl.u32 %v2052, 7
        %v2054 = vsub.s32 %v1145, %v2053
        %v2055 = vrot.slane %v1958, %v2054
        %v2056 = vlaneseq
        %v2057 = vshrl.u32 %v2056, 7
        %v2058 = vsub.s32 %v1150, %v2057
        %v2059 = vrot.slane %v1961, %v2058
        %v2060 = vsel %vm1155, %v2059, %v2055
        %v2061 = vlaneseq
        %v2062 = vshrl.u32 %v2061, 7
        %v2063 = vsub.s32 %v1145, %v2062
        %v2064 = vrot.slane %v1964, %v2063
        %v2065 = vlaneseq
        %v2066 = vshrl.u32 %v2065, 7
        %v2067 = vsub.s32 %v1150, %v2066
        %v2068 = vrot.slane %v1967, %v2067
        %v2069 = vsel %vm1155, %v2068, %v2064
        %v2070 = vlaneseq
        %v2071 = vshrl.u32 %v2070, 7
        %v2072 = vsub.s32 %v1145, %v2071
        %v2073 = vrot.slane %v1970, %v2072
        %v2074 = vlaneseq
        %v2075 = vshrl.u32 %v2074, 7
        %v2076 = vsub.s32 %v1150, %v2075
        %v2077 = vrot.slane %v1973, %v2076
        %v2078 = vsel %vm1155, %v2077, %v2073
        %v2079 = vlaneseq
        %v2080 = vshrl.u32 %v2079, 7
        %v2081 = vsub.s32 %v1145, %v2080
        %v2082 = vrot.slane %v1976, %v2081
        %v2083 = vlaneseq
        %v2084 = vshrl.u32 %v2083, 7
        %v2085 = vsub.s32 %v1150, %v2084
        %v2086 = vrot.slane %v1979, %v2085
        %v2087 = vsel %vm1155, %v2086, %v2082
        %v2088 = vlaneseq
        %v2089 = vshrl.u32 %v2088, 7
        %v2090 = vsub.s32 %v1145, %v2089
        %v2091 = vrot.slane %v1982, %v2090
        %v2092 = vlaneseq
        %v2093 = vshrl.u32 %v2092, 7
        %v2094 = vsub.s32 %v1150, %v2093
        %v2095 = vrot.slane %v1985, %v2094
        %v2096 = vsel %vm1155, %v2095, %v2091
        %v2097 = vlaneseq
        %v2098 = vshrl.u32 %v2097, 7
        %v2099 = vsub.s32 %v1145, %v2098
        %v2100 = vrot.slane %v1988, %v2099
        %v2101 = vlaneseq
        %v2102 = vshrl.u32 %v2101, 7
        %v2103 = vsub.s32 %v1150, %v2102
        %v2104 = vrot.slane %v1991, %v2103
        %v2105 = vsel %vm1155, %v2104, %v2100
        %v2106 = vlaneseq
        %v2107 = vshrl.u32 %v2106, 7
        %v2108 = vsub.s32 %v1145, %v2107
        %v2109 = vrot.slane %v1994, %v2108
        %v2110 = vlaneseq
        %v2111 = vshrl.u32 %v2110, 7
        %v2112 = vsub.s32 %v1150, %v2111
        %v2113 = vrot.slane %v1997, %v2112
        %v2114 = vsel %vm1155, %v2113, %v2109
        %v2115 = vlaneseq
        %v2116 = vshrl.u32 %v2115, 7
        %v2117 = vsub.s32 %v1145, %v2116
        %v2118 = vrot.slane %v2000, %v2117
        %v2119 = vlaneseq
        %v2120 = vshrl.u32 %v2119, 7
        %v2121 = vsub.s32 %v1150, %v2120
        %v2122 = vrot.slane %v2003, %v2121
        %v2123 = vsel %vm1155, %v2122, %v2118
        %v2124 = vlaneseq
        %v2125 = vshrl.u32 %v2124, 7
        %v2126 = vsub.s32 %v1145, %v2125
        %v2127 = vrot.slane %v2006, %v2126
        %v2128 = vlaneseq
        %v2129 = vshrl.u32 %v2128, 7
        %v2130 = vsub.s32 %v1150, %v2129
        %v2131 = vrot.slane %v2009, %v2130
        %v2132 = vsel %vm1155, %v2131, %v2127
        %v2133 = vlaneseq
        %v2134 = vshrl.u32 %v2133, 7
        %v2135 = vsub.s32 %v1145, %v2134
        %v2136 = vrot.slane %v2012, %v2135
        %v2137 = vlaneseq
        %v2138 = vshrl.u32 %v2137, 7
        %v2139 = vsub.s32 %v1150, %v2138
        %v2140 = vrot.slane %v2015, %v2139
        %v2141 = vsel %vm1155, %v2140, %v2136
        %v2142 = vlaneseq
        %v2143 = vshrl.u32 %v2142, 7
        %v2144 = vsub.s32 %v1145, %v2143
        %v2145 = vrot.slane %v2018, %v2144
        %v2146 = vlaneseq
        %v2147 = vshrl.u32 %v2146, 7
        %v2148 = vsub.s32 %v1150, %v2147
        %v2149 = vrot.slane %v2021, %v2148
        %v2150 = vsel %vm1155, %v2149, %v2145
        %v2151 = vlaneseq
        %v2152 = vshrl.u32 %v2151, 7
        %v2153 = vsub.s32 %v1145, %v2152
        %v2154 = vrot.slane %v2024, %v2153
        %v2155 = vlaneseq
        %v2156 = vshrl.u32 %v2155, 7
        %v2157 = vsub.s32 %v1150, %v2156
        %v2158 = vrot.slane %v2027, %v2157
        %v2159 = vsel %vm1155, %v2158, %v2154
        %v2160 = vlaneseq
        %v2161 = vshrl.u32 %v2160, 7
        %v2162 = vsub.s32 %v1145, %v2161
        %v2163 = vrot.slane %v2030, %v2162
        %v2164 = vlaneseq
        %v2165 = vshrl.u32 %v2164, 7
        %v2166 = vsub.s32 %v1150, %v2165
        %v2167 = vrot.slane %v2033, %v2166
        %v2168 = vsel %vm1155, %v2167, %v2163
        %v2169 = vlaneseq
        %v2170 = vshrl.u32 %v2169, 7
        %v2171 = vsub.s32 %v1145, %v2170
        %v2172 = vrot.slane %v2036, %v2171
        %v2173 = vlaneseq
        %v2174 = vshrl.u32 %v2173, 7
        %v2175 = vsub.s32 %v1150, %v2174
        %v2176 = vrot.slane %v2039, %v2175
        %v2177 = vsel %vm1155, %v2176, %v2172
        %v2178 = vlaneseq
        %v2179 = vshrl.u32 %v2178, 7
        %v2180 = vsub.s32 %v1145, %v2179
        %v2181 = vrot.slane %v2042, %v2180
        %v2182 = vlaneseq
        %v2183 = vshrl.u32 %v2182, 7
        %v2184 = vsub.s32 %v1150, %v2183
        %v2185 = vrot.slane %v2045, %v2184
        %v2186 = vsel %vm1155, %v2185, %v2181
        %v2187 = vlaneseq
        %v2188 = vshrl.u32 %v2187, 7
        %v2189 = vsub.s32 %v1145, %v2188
        %v2190 = vrot.slane %v2048, %v2189
        %v2191 = vlaneseq
        %v2192 = vshrl.u32 %v2191, 7
        %v2193 = vsub.s32 %v1150, %v2192
        %v2194 = vrot.slane %v2051, %v2193
        %v2195 = vsel %vm1155, %v2194, %v2190
        %v2196 = vsel %vm1292, %v2069, %v2060
        %v2197 = vsel %vm1294, %v2078, %v2196
        %v2198 = vsel %vm1296, %v2087, %v2197
        %v2199 = vsel %vm1298, %v2096, %v2198
        %v2200 = vsel %vm1300, %v2105, %v2199
        %v2201 = vsel %vm1302, %v2114, %v2200
        %v2202 = vsel %vm1304, %v2123, %v2201
        %v2203 = vsel %vm1292, %v2141, %v2132
        %v2204 = vsel %vm1294, %v2150, %v2203
        %v2205 = vsel %vm1296, %v2159, %v2204
        %v2206 = vsel %vm1298, %v2168, %v2205
        %v2207 = vsel %vm1300, %v2177, %v2206
        %v2208 = vsel %vm1302, %v2186, %v2207
        %v2209 = vsel %vm1304, %v2195, %v2208
        %2212 = vst.msk [vmem:[%s322] sm:$0xff] %vm1315, %v2202
        %2213 = vst.msk [vmem:[%s322 + $0x8] sm:$0xff] %vm1315, %v2209
        %s2214 = smul.u32 2, %s21
        %p2215 = scmp.lt.s32.totalorder %s2214, 3
        %s2216 = scalar_select %p2215, %s2214, 3
        %s2217 = smul.addr %s2216, 8
        %s2218 = scalar_lea.vmem %s7, %s2217
        // Predicated region
        $region53: #{tpu_custom_call.1} parent=47 // pred_check
          %p2219 = pneg %p196
        $region54: #{tpu_custom_call.1} parent=47 // pred_check_branch
          %2221 = sbr.rel (%p2219) target = $region56
        $region55: #{tpu_custom_call.1} parent=47 // pred_region
          %s2222 = smul.u32 2, %s21
        $region56: #{tpu_custom_call.1} parent=47 // pred_fallthru
          _
      $region48: #{tpu_custom_call.1} parent=5 // pred_fallthru
        _
      %p2223 = scmp.le.s32.totalorder 2, %s16
      // Predicated region
      $region57: #{tpu_custom_call.1} parent=5 // pred_check
        %p2224 = pneg %p2223
      $region58: #{tpu_custom_call.1} parent=5 // pred_check_branch
        %2226 = sbr.rel (%p2224) target = $region60
      $region59: #{tpu_custom_call.1} parent=5 // pred_region
        %s2227 = ssub.s32 %s16, 2
        // Predicated region
        $region61: #{tpu_custom_call.1} parent=59 // pred_check
          %p2228 = pneg %p202
        $region62: #{tpu_custom_call.1} parent=59 // pred_check_branch
          %2230 = sbr.rel (%p2228) target = $region64
        $region63: #{tpu_custom_call.1} parent=59 // pred_region
          %s2231 = smul.u32 2, %s22
          %p2232 = scmp.lt.s32.totalorder %s2231, 3
          %s2233 = scalar_select %p2232, %s2231, 3
          %s2234 = smul.addr %s2233, 8
          %s2235 = scalar_lea.vmem %s7, %s2234
        $region64: #{tpu_custom_call.1} parent=59 // pred_fallthru
          _
      $region60: #{tpu_custom_call.1} parent=5 // pred_fallthru
        _
    $region6: #{tpu_custom_call.1} parent=1 // loop_footer
      %s20 = sadd.s32 1, %s16
    $region7: #{tpu_custom_call.1} parent=1 // loop_footer_branch
      %15 = sbr.rel target = $region3
    $region8: #{tpu_custom_call.1} parent=1 // loop_exit
      _
    %2236 = vsyncpa [#allocation3], 1
    %s2237 = scalar_lea.sflag [#allocation3], 1
    %2238 = vsyncpa %s2237, 1

</llo_original>
